<compile_context>
chip_gen: v5e
topology: v5e:2x2
jax: 0.10.0
libtpu: 0.0.40
codegen_flags: <defaults>
</compile_context>

<pallas_src>
import functools

import numpy as np
import jax
import jax.numpy as jnp
from jax.experimental import pallas as pl
from jax.experimental.pallas import tpu as pltpu


# ----------------------------------------------------------------------------
# Kernel A: node-level path (encoder, heads, node decoder, semantic proj,
# pooling, edge-layer-0 per-node precompute).
# ----------------------------------------------------------------------------
def _node_kernel(
    x_ref, a_ref,
    w0_ref, b0_ref, w1_ref, b1_ref, w2_ref, b2_ref,
    lng_ref, lnb_ref,
    wmu_ref, bmu_ref, wlv_ref, blv_ref,
    wpr_ref, bpr_ref,
    ndw0_ref, ndb0_ref, ndw1_ref, ndb1_ref,
    spw0_ref, spb0_ref, spw1_ref, spb1_ref,
    epw0a_ref, epw0b_ref, epb0_ref,
    # outputs
    mu_ref, lv_ref, nemb_ref, nfeat_ref, gemb_ref, sem_ref, hza_ref, hzb_ref,
):
    f32 = jnp.float32
    bf16 = jnp.bfloat16

    def mm(lhs, rhs):
        # bf16 MXU inputs, f32 accumulation
        return jnp.dot(lhs.astype(bf16), rhs, preferred_element_type=f32)

    x = x_ref[...]            # (N, C)  bf16
    a = a_ref[...]            # (N, N)  bf16 (normalized adjacency w/ self loops)

    # ---- GraphEncoder: 3 GCN layers (BN folded into W/b, eval mode) ----
    # layer 0: compute (A X) W0 since C <= H (cheaper association)
    ax = mm(a, x)
    h = jnp.maximum(mm(ax, w0_ref[...]) + b0_ref[...], 0.0)
    # layer 1
    h = jnp.maximum(mm(a, mm(h, w1_ref[...])) + b1_ref[...], 0.0)
    # layer 2 (no BN/ReLU), then LayerNorm (f32 stats, biased var, eps=1e-5)
    h = mm(a, mm(h, w2_ref[...])) + b2_ref[...]
    m = jnp.mean(h, axis=-1, keepdims=True)
    v = jnp.mean((h - m) * (h - m), axis=-1, keepdims=True)
    nemb = (h - m) * jax.lax.rsqrt(v + 1e-5) * lng_ref[...] + lnb_ref[...]
    nemb_ref[...] = nemb

    # graph embedding = global mean pool (single graph, batch = zeros)
    gemb_ref[...] = jnp.mean(nemb, axis=0, keepdims=True)

    # ---- latent heads; z = mu (eval-mode reparameterize) ----
    mu = mm(nemb, wmu_ref[...]) + bmu_ref[...]
    lv = mm(nemb, wlv_ref[...]) + blv_ref[...]
    mu_ref[...] = mu
    lv_ref[...] = lv

    # ---- semantic projection on z ----
    s = jnp.maximum(mm(mu, spw0_ref[...]) + spb0_ref[...], 0.0)
    sem_ref[...] = mm(s, spw1_ref[...]) + spb1_ref[...]

    # ---- decode: node_proj + ReLU ----
    hz = jnp.maximum(mm(mu, wpr_ref[...]) + bpr_ref[...], 0.0)

    # ---- node decoder MLP: Linear(BN folded) -> ReLU -> (Dropout) -> Linear ----
    nd = jnp.maximum(mm(hz, ndw0_ref[...]) + ndb0_ref[...], 0.0)
    nfeat_ref[...] = mm(nd, ndw1_ref[...]) + ndb1_ref[...]

    # ---- edge predictor layer-0 factorization (BN folded, bias into hzA) ----
    # cat([h_i, h_j]) @ W0 + b0  ==  (hz @ W0[:H] + b0)[i] + (hz @ W0[H:])[j]
    hza_ref[...] = mm(hz, epw0a_ref[...]) + epb0_ref[...]
    hzb_ref[...] = mm(hz, epw0b_ref[...])


# ----------------------------------------------------------------------------
# Kernel B: edge predictor over all N*N ordered pairs, gridded over blocks of
# source nodes i.  Pair row r = i*N + j.
# ----------------------------------------------------------------------------
def _edge_kernel(hza_ref, hzb_ref, w1_ref, b1_ref, w2_ref, b2_ref, out_ref):
    f32 = jnp.float32
    bf16 = jnp.bfloat16
    bi, h = hza_ref.shape
    n = hzb_ref.shape[0]

    # pair activations for this block: e0[p*N + q, :] = hzA[p, :] + hzB[q, :]
    e0 = hza_ref[...][:, None, :] + hzb_ref[...][None, :, :]      # (BI, N, H)
    e0 = jnp.maximum(e0, 0.0).reshape(bi * n, h)                  # ReLU (BN folded)

    e1 = jnp.dot(e0.astype(bf16), w1_ref[...],
                 preferred_element_type=f32) + b1_ref[...]
    e1 = jnp.maximum(e1, 0.0)

    out_ref[...] = jnp.dot(e1.astype(bf16), w2_ref[...],
                           preferred_element_type=f32) + b2_ref[...]


# ----------------------------------------------------------------------------
# Wrapper
# ----------------------------------------------------------------------------
def _pick_block_i(n, target_pair_rows=2048):
    """Largest BI with n % BI == 0, (BI == n or BI % 8 == 0) and BI*n roughly
    <= target_pair_rows (tile sized for v7x's 64 MiB VMEM; sweep larger on
    v5e/v6e which have 128 MiB)."""
    cap = max(1, target_pair_rows // max(n, 1))
    for cand in range(min(n, cap), 0, -1):
        if n % cand == 0 and (cand == n or cand % 8 == 0):
            return cand
    return n


def graph_compression_forward(x, a_norm, params, *, edge_dim, block_i=None):
    """Fused GraphCompressionModel forward (eval mode). Returns the output dict."""
    n = x.shape[0]
    hid = params["w2"].shape[1]
    lat = params["wmu"].shape[1]
    feat = params["ndw1"].shape[1]
    ep = params["epw2p"].shape[1]           # lane-dense padded edge-output width

    xb = x.astype(jnp.bfloat16)
    ab = a_norm.astype(jnp.bfloat16)

    # ---------------- node kernel (single block) ----------------
    node_args = [
        xb, ab,
        params["w0"], params["b0"], params["w1"], params["b1"],
        params["w2"], params["b2"], params["lng"], params["lnb"],
        params["wmu"], params["bmu"], params["wlv"], params["blv"],
        params["wpr"], params["bpr"],
        params["ndw0"], params["ndb0"], params["ndw1"], params["ndb1"],
        params["spw0"], params["spb0"], params["spw1"], params["spb1"],
        params["epw0a"], params["epw0b"], params["epb0"],
    ]
    node_out_shapes = (
        jax.ShapeDtypeStruct((n, lat), jnp.float32),    # mu
        jax.ShapeDtypeStruct((n, lat), jnp.float32),    # log_var
        jax.ShapeDtypeStruct((n, hid), jnp.float32),    # node_embeddings
        jax.ShapeDtypeStruct((n, feat), jnp.float32),   # node_features
        jax.ShapeDtypeStruct((1, hid), jnp.float32),    # graph_embedding
        jax.ShapeDtypeStruct((n, hid), jnp.float32),    # semantic_features
        jax.ShapeDtypeStruct((n, hid), jnp.float32),    # hzA
        jax.ShapeDtypeStruct((n, hid), jnp.float32),    # hzB
    )
    vmem = pl.BlockSpec(memory_space=pltpu.MemorySpace.VMEM)
    mu, log_var, nemb, nfeat, gemb, sem, hza, hzb = pl.pallas_call(
        _node_kernel,
        out_shape=node_out_shapes,
        in_specs=[vmem] * len(node_args),
        out_specs=tuple([vmem] * len(node_out_shapes)),
    )(*node_args)

    # ---------------- edge kernel (gridded over i-node blocks) ----------------
    bi = _pick_block_i(n) if block_i is None else block_i
    assert n % bi == 0 and (bi == n or bi % 8 == 0), "invalid block_i"
    grid = (n // bi,)
    tp = bi * n                             # pair rows per tile

    # per-tile working set (double-buffered in/out + intermediates), with margin
    wbytes = 2 * (hid * hid + hid * ep)                       # bf16 weights
    work = (2 * bi * hid * 4 + 2 * n * hid * 4 + 2 * wbytes
            + (hid + ep) * 4 + 2 * tp * ep * 4 + 3 * tp * hid * 4)
    vmem_limit = int(min(64 * 2 ** 20, max(32 * 2 ** 20, 2 * work)))

    flops = 2 * n * n * hid * (hid + ep) + 4 * n * n * hid
    bytes_accessed = 2 * n * hid * 4 + wbytes + (hid + ep) * 4 + n * n * ep * 4

    eout = pl.pallas_call(
        _edge_kernel,
        out_shape=jax.ShapeDtypeStruct((n * n, ep), jnp.float32),
        grid=grid,
        in_specs=[
            pl.BlockSpec((bi, hid), lambda i: (i, 0)),     # hzA: block of i-nodes
            pl.BlockSpec((n, hid), lambda i: (0, 0)),      # hzB: resident
            pl.BlockSpec((hid, hid), lambda i: (0, 0)),    # epw1 (bf16, BN folded)
            pl.BlockSpec((1, hid), lambda i: (0, 0)),      # epb1
            pl.BlockSpec((hid, ep), lambda i: (0, 0)),     # epw2 (lane-dense pad)
            pl.BlockSpec((1, ep), lambda i: (0, 0)),       # epb2 (lane-dense pad)
        ],
        out_specs=pl.BlockSpec((tp, ep), lambda i: (i, 0)),
        compiler_params=pltpu.CompilerParams(
            dimension_semantics=("parallel",),
            vmem_limit_bytes=vmem_limit,
        ),
        cost_estimate=pl.CostEstimate(
            flops=flops, transcendentals=0, bytes_accessed=int(bytes_accessed)),
    )(hza, hzb, params["epw1"], params["epb1"], params["epw2p"], params["epb2p"])

    # Glue: slice / reshape lane-dense edge output (no compute).
    edge_logits = eout[:, 0].reshape(n, n)
    edge_features = eout[:, 1:1 + edge_dim].reshape(n, n, edge_dim)
    z = mu  # eval-mode reparameterize
    return {
        "mu": mu,
        "log_var": log_var,
        "z": z,
        "node_features": nfeat,
        "edge_logits": edge_logits,
        "edge_features": edge_features,
        "node_embeddings": nemb,
        "graph_embedding": gemb,
        "semantic_features": sem,
    }


# ----------------------------------------------------------------------------
# Host-side helpers: adjacency, raw params, eval-mode folding
# ----------------------------------------------------------------------------
def build_norm_adj(n, edges):
    """Dense D^{-1/2}(A + I)D^{-1/2} with PyG 'source_to_target' convention."""
    a = np.zeros((n, n), np.float32)
    for s, d in edges:
        a[d, s] = 1.0                     # aggregate at target d from source s
    a = a + np.eye(n, dtype=np.float32)   # add_self_loops=True
    deg = a.sum(axis=1)
    dinv = 1.0 / np.sqrt(deg)
    return (dinv[:, None] * a) * dinv[None, :]


def init_raw_params(key, in_c, hidden, latent, feat_dim, edge_dim):
    keys = iter(jax.random.split(key, 64))

    def lin(din, dout, scale=0.1):
        return jax.random.normal(next(keys), (din, dout), jnp.float32) * scale

    def vec(d, scale=0.05):
        return jax.random.normal(next(keys), (1, d), jnp.float32) * scale

    def bn(d):
        gamma = 1.0 + 0.1 * jax.random.normal(next(keys), (1, d), jnp.float32)
        beta = 0.05 * jax.random.normal(next(keys), (1, d), jnp.float32)
        mean = 0.05 * jax.random.normal(next(keys), (1, d), jnp.float32)
        var = 1.0 + 0.1 * jax.random.uniform(next(keys), (1, d), jnp.float32)
        return gamma, beta, mean, var

    raw = {}
    # GraphEncoder: GCN x3 (BN after first two), LayerNorm
    raw["w0"], raw["b0"], raw["bn0"] = lin(in_c, hidden), vec(hidden), bn(hidden)
    raw["w1"], raw["b1"], raw["bn1"] = lin(hidden, hidden), vec(hidden), bn(hidden)
    raw["w2"], raw["b2"] = lin(hidden, hidden), vec(hidden)
    raw["lng"] = 1.0 + 0.1 * jax.random.normal(next(keys), (1, hidden), jnp.float32)
    raw["lnb"] = 0.05 * jax.random.normal(next(keys), (1, hidden), jnp.float32)
    # latent heads + node projection
    raw["wmu"], raw["bmu"] = lin(hidden, latent), vec(latent)
    raw["wlv"], raw["blv"] = lin(hidden, latent), vec(latent)
    raw["wpr"], raw["bpr"] = lin(latent, hidden), vec(hidden)
    # GraphDecoder node MLP (num_layers-1 = 2): Linear->BN->ReLU->Drop->Linear
    raw["ndw0"], raw["ndb0"], raw["ndbn0"] = lin(hidden, hidden), vec(hidden), bn(hidden)
    raw["ndw1"], raw["ndb1"] = lin(hidden, feat_dim), vec(feat_dim)
    # GraphDecoder edge MLP
    raw["epw0"], raw["epb0"], raw["epbn0"] = lin(2 * hidden, hidden), vec(hidden), bn(hidden)
    raw["epw1"], raw["epb1"], raw["epbn1"] = lin(hidden, hidden), vec(hidden), bn(hidden)
    raw["epw2"], raw["epb2"] = lin(hidden, 1 + edge_dim), vec(1 + edge_dim)
    # GraphCompressionModel.semantic_proj: Linear(L,H) -> ReLU -> Linear(H,H)
    raw["spw0"], raw["spb0"] = lin(latent, hidden), vec(hidden)
    raw["spw1"], raw["spb1"] = lin(hidden, hidden), vec(hidden)
    return raw


def fold_params(raw, hidden, edge_dim, lane_pad=128):
    """Eval-mode folding: BatchNorm -> adjacent Linear, split the edge layer-0
    weight into per-node halves, pad the edge output layer to a lane-dense
    width, cast matmul weights to bf16 (biases / LayerNorm stay f32)."""
    f32, bf16 = jnp.float32, jnp.bfloat16

    def bn_fold(w, b, bn_params, eps=1e-5):
        gamma, beta, mean, var = bn_params
        s = gamma / jnp.sqrt(var + eps)
        return w * s, b * s + (beta - mean * s)

    w0, b0 = bn_fold(raw["w0"], raw["b0"], raw["bn0"])
    w1, b1 = bn_fold(raw["w1"], raw["b1"], raw["bn1"])
    ndw0, ndb0 = bn_fold(raw["ndw0"], raw["ndb0"], raw["ndbn0"])
    epw0, epb0 = bn_fold(raw["epw0"], raw["epb0"], raw["epbn0"])
    epw1, epb1 = bn_fold(raw["epw1"], raw["epb1"], raw["epbn1"])

    weights = {
        "w0": w0, "w1": w1, "w2": raw["w2"],
        "wmu": raw["wmu"], "wlv": raw["wlv"], "wpr": raw["wpr"],
        "ndw0": ndw0, "ndw1": raw["ndw1"],
        "spw0": raw["spw0"], "spw1": raw["spw1"],
        "epw0a": epw0[:hidden], "epw0b": epw0[hidden:], "epw1": epw1,
    }
    biases = {
        "b0": b0, "b1": b1, "b2": raw["b2"],
        "lng": raw["lng"], "lnb": raw["lnb"],
        "bmu": raw["bmu"], "blv": raw["blv"], "bpr": raw["bpr"],
        "ndb0": ndb0, "ndb1": raw["ndb1"],
        "spb0": raw["spb0"], "spb1": raw["spb1"],
        "epb0": epb0, "epb1": epb1,
    }
    p = {k: v.astype(bf16) for k, v in weights.items()}
    p.update({k: v.astype(f32) for k, v in biases.items()})

    # lane-dense padded edge output layer (1 + edge_dim << 128 lanes)
    e1 = raw["epw2"].shape[1]
    ep = max(lane_pad, e1)
    w2p = jnp.zeros((hidden, ep), f32).at[:, :e1].set(raw["epw2"])
    b2p = jnp.zeros((1, ep), f32).at[:, :e1].set(raw["epb2"])
    p["epw2p"] = w2p.astype(bf16)
    p["epb2p"] = b2p
    return p


# ----------------------------------------------------------------------------
if __name__ == "__main__":
    N, IN_C, HID, LAT, EDG = 16, 16, 32, 16, 4
    FEAT = IN_C   # GraphCompressionModel reconstructs the input node features

    key = jax.random.PRNGKey(0)
    kx, kp = jax.random.split(key)
    x = jax.random.normal(kx, (N, IN_C), jnp.float32)

    # small undirected ring graph with chords; edge attrs are ignored by GCNConv
    edges = []
    for i in range(N):
        edges.append((i, (i + 1) % N))
        edges.append(((i + 1) % N, i))
        edges.append((i, (i + 3) % N))
        edges.append(((i + 3) % N, i))
    a_norm = jnp.asarray(build_norm_adj(N, edges))

    raw = init_raw_params(kp, IN_C, HID, LAT, FEAT, EDG)
    params = fold_params(raw, HID, EDG)

    fwd = jax.jit(functools.partial(graph_compression_forward,
                                    edge_dim=EDG, block_i=8))  # grid = (2,)
    out = jax.block_until_ready(fwd(x, a_norm, params))

    assert out["mu"].shape == (N, LAT)
    assert out["log_var"].shape == (N, LAT)
    assert out["z"].shape == (N, LAT)
    assert out["node_features"].shape == (N, FEAT)
    assert out["edge_logits"].shape == (N, N)
    assert out["edge_features"].shape == (N, N, EDG)
    assert out["node_embeddings"].shape == (N, HID)
    assert out["graph_embedding"].shape == (1, HID)
    assert out["semantic_features"].shape == (N, HID)
    assert bool(jnp.isfinite(out["edge_logits"]).all())
    assert bool(jnp.isfinite(out["node_features"]).all())
    print("KERNEL_OK")
</pallas_src>

<mosaic_0001>
module attributes {stable_mosaic.version = 11 : i64} {
  func.func @_node_kernel(%arg0: memref<16x16xbf16, #tpu.memory_space<vmem>>, %arg1: memref<16x16xbf16, #tpu.memory_space<vmem>>, %arg2: memref<16x32xbf16, #tpu.memory_space<vmem>>, %arg3: memref<1x32xf32, #tpu.memory_space<vmem>>, %arg4: memref<32x32xbf16, #tpu.memory_space<vmem>>, %arg5: memref<1x32xf32, #tpu.memory_space<vmem>>, %arg6: memref<32x32xbf16, #tpu.memory_space<vmem>>, %arg7: memref<1x32xf32, #tpu.memory_space<vmem>>, %arg8: memref<1x32xf32, #tpu.memory_space<vmem>>, %arg9: memref<1x32xf32, #tpu.memory_space<vmem>>, %arg10: memref<32x16xbf16, #tpu.memory_space<vmem>>, %arg11: memref<1x16xf32, #tpu.memory_space<vmem>>, %arg12: memref<32x16xbf16, #tpu.memory_space<vmem>>, %arg13: memref<1x16xf32, #tpu.memory_space<vmem>>, %arg14: memref<16x32xbf16, #tpu.memory_space<vmem>>, %arg15: memref<1x32xf32, #tpu.memory_space<vmem>>, %arg16: memref<32x32xbf16, #tpu.memory_space<vmem>>, %arg17: memref<1x32xf32, #tpu.memory_space<vmem>>, %arg18: memref<32x16xbf16, #tpu.memory_space<vmem>>, %arg19: memref<1x16xf32, #tpu.memory_space<vmem>>, %arg20: memref<16x32xbf16, #tpu.memory_space<vmem>>, %arg21: memref<1x32xf32, #tpu.memory_space<vmem>>, %arg22: memref<32x32xbf16, #tpu.memory_space<vmem>>, %arg23: memref<1x32xf32, #tpu.memory_space<vmem>>, %arg24: memref<32x32xbf16, #tpu.memory_space<vmem>>, %arg25: memref<32x32xbf16, #tpu.memory_space<vmem>>, %arg26: memref<1x32xf32, #tpu.memory_space<vmem>>, %arg27: memref<16x16xf32, #tpu.memory_space<vmem>>, %arg28: memref<16x16xf32, #tpu.memory_space<vmem>>, %arg29: memref<16x32xf32, #tpu.memory_space<vmem>>, %arg30: memref<16x16xf32, #tpu.memory_space<vmem>>, %arg31: memref<1x32xf32, #tpu.memory_space<vmem>>, %arg32: memref<16x32xf32, #tpu.memory_space<vmem>>, %arg33: memref<16x32xf32, #tpu.memory_space<vmem>>, %arg34: memref<16x32xf32, #tpu.memory_space<vmem>>) attributes {dimension_semantics = [], scalar_prefetch = 0 : i64, scratch_operands = 0 : i64, tpu.core_type = #tpu.core_type<tc>} {
    %c0 = arith.constant 0 : index
    %c0_0 = arith.constant 0 : index
    %0 = vector.load %arg0[%c0, %c0_0] : memref<16x16xbf16, #tpu.memory_space<vmem>>, vector<16x16xbf16>
    %c0_1 = arith.constant 0 : index
    %c0_2 = arith.constant 0 : index
    %1 = vector.load %arg1[%c0_1, %c0_2] : memref<16x16xbf16, #tpu.memory_space<vmem>>, vector<16x16xbf16>
    %cst = arith.constant dense<0.000000e+00> : vector<16x16xf32>
    %2 = tpu.matmul %1, %0, %cst {dimension_numbers = #tpu.dot_dimension_numbers<[1], [0], [0], [1], [0, 0, 1, 1], [], []>} : vector<16x16xbf16>, vector<16x16xbf16>, vector<16x16xf32> -> vector<16x16xf32>
    %c0_3 = arith.constant 0 : index
    %c0_4 = arith.constant 0 : index
    %3 = vector.load %arg2[%c0_3, %c0_4] : memref<16x32xbf16, #tpu.memory_space<vmem>>, vector<16x32xbf16>
    %4 = arith.truncf %2 : vector<16x16xf32> to vector<16x16xbf16>
    %cst_5 = arith.constant dense<0.000000e+00> : vector<16x32xf32>
    %5 = tpu.matmul %4, %3, %cst_5 {dimension_numbers = #tpu.dot_dimension_numbers<[1], [0], [0], [1], [0, 0, 1, 1], [], []>} : vector<16x16xbf16>, vector<16x32xbf16>, vector<16x32xf32> -> vector<16x32xf32>
    %c0_6 = arith.constant 0 : index
    %c0_7 = arith.constant 0 : index
    %6 = vector.load %arg3[%c0_6, %c0_7] : memref<1x32xf32, #tpu.memory_space<vmem>>, vector<1x32xf32>
    %7 = vector.broadcast %6 : vector<1x32xf32> to vector<16x32xf32>
    %8 = arith.addf %5, %7 : vector<16x32xf32>
    %cst_8 = arith.constant 0.000000e+00 : f32
    %9 = vector.broadcast %cst_8 : f32 to vector<16x32xf32>
    %10 = arith.maximumf %8, %9 : vector<16x32xf32>
    %c0_9 = arith.constant 0 : index
    %c0_10 = arith.constant 0 : index
    %11 = vector.load %arg4[%c0_9, %c0_10] : memref<32x32xbf16, #tpu.memory_space<vmem>>, vector<32x32xbf16>
    %12 = arith.truncf %10 : vector<16x32xf32> to vector<16x32xbf16>
    %cst_11 = arith.constant dense<0.000000e+00> : vector<16x32xf32>
    %13 = tpu.matmul %12, %11, %cst_11 {dimension_numbers = #tpu.dot_dimension_numbers<[1], [0], [0], [1], [0, 0, 1, 1], [], []>} : vector<16x32xbf16>, vector<32x32xbf16>, vector<16x32xf32> -> vector<16x32xf32>
    %cst_12 = arith.constant dense<0.000000e+00> : vector<16x32xf32>
    %14 = tpu.matmul %1, %13, %cst_12 {dimension_numbers = #tpu.dot_dimension_numbers<[1], [0], [0], [1], [0, 0, 1, 1], [], []>} : vector<16x16xbf16>, vector<16x32xf32>, vector<16x32xf32> -> vector<16x32xf32>
    %c0_13 = arith.constant 0 : index
    %c0_14 = arith.constant 0 : index
    %15 = vector.load %arg5[%c0_13, %c0_14] : memref<1x32xf32, #tpu.memory_space<vmem>>, vector<1x32xf32>
    %16 = vector.broadcast %15 : vector<1x32xf32> to vector<16x32xf32>
    %17 = arith.addf %14, %16 : vector<16x32xf32>
    %cst_15 = arith.constant 0.000000e+00 : f32
    %18 = vector.broadcast %cst_15 : f32 to vector<16x32xf32>
    %19 = arith.maximumf %17, %18 : vector<16x32xf32>
    %c0_16 = arith.constant 0 : index
    %c0_17 = arith.constant 0 : index
    %20 = vector.load %arg6[%c0_16, %c0_17] : memref<32x32xbf16, #tpu.memory_space<vmem>>, vector<32x32xbf16>
    %21 = arith.truncf %19 : vector<16x32xf32> to vector<16x32xbf16>
    %cst_18 = arith.constant dense<0.000000e+00> : vector<16x32xf32>
    %22 = tpu.matmul %21, %20, %cst_18 {dimension_numbers = #tpu.dot_dimension_numbers<[1], [0], [0], [1], [0, 0, 1, 1], [], []>} : vector<16x32xbf16>, vector<32x32xbf16>, vector<16x32xf32> -> vector<16x32xf32>
    %cst_19 = arith.constant dense<0.000000e+00> : vector<16x32xf32>
    %23 = tpu.matmul %1, %22, %cst_19 {dimension_numbers = #tpu.dot_dimension_numbers<[1], [0], [0], [1], [0, 0, 1, 1], [], []>} : vector<16x16xbf16>, vector<16x32xf32>, vector<16x32xf32> -> vector<16x32xf32>
    %c0_20 = arith.constant 0 : index
    %c0_21 = arith.constant 0 : index
    %24 = vector.load %arg7[%c0_20, %c0_21] : memref<1x32xf32, #tpu.memory_space<vmem>>, vector<1x32xf32>
    %25 = vector.broadcast %24 : vector<1x32xf32> to vector<16x32xf32>
    %26 = arith.addf %23, %25 : vector<16x32xf32>
    %cst_22 = arith.constant dense<0.000000e+00> : vector<16xf32>
    %27 = vector.multi_reduction <add>, %26, %cst_22 [1] : vector<16x32xf32> to vector<16xf32>
    %28 = vector.shape_cast %27 : vector<16xf32> to vector<16x1xf32>
    %cst_23 = arith.constant 3.200000e+01 : f32
    %29 = vector.broadcast %cst_23 : f32 to vector<16x1xf32>
    %30 = arith.divf %28, %29 : vector<16x1xf32>
    %31 = vector.broadcast %30 : vector<16x1xf32> to vector<16x32xf32>
    %32 = arith.subf %26, %31 : vector<16x32xf32>
    %33 = vector.broadcast %30 : vector<16x1xf32> to vector<16x32xf32>
    %34 = arith.subf %26, %33 : vector<16x32xf32>
    %35 = arith.mulf %32, %34 : vector<16x32xf32>
    %cst_24 = arith.constant dense<0.000000e+00> : vector<16xf32>
    %36 = vector.multi_reduction <add>, %35, %cst_24 [1] : vector<16x32xf32> to vector<16xf32>
    %37 = vector.shape_cast %36 : vector<16xf32> to vector<16x1xf32>
    %cst_25 = arith.constant 3.200000e+01 : f32
    %38 = vector.broadcast %cst_25 : f32 to vector<16x1xf32>
    %39 = arith.divf %37, %38 : vector<16x1xf32>
    %40 = vector.broadcast %30 : vector<16x1xf32> to vector<16x32xf32>
    %41 = arith.subf %26, %40 : vector<16x32xf32>
    %cst_26 = arith.constant 9.99999974E-6 : f32
    %42 = vector.broadcast %cst_26 : f32 to vector<16x1xf32>
    %43 = arith.addf %39, %42 : vector<16x1xf32>
    %44 = math.rsqrt %43 : vector<16x1xf32>
    %45 = vector.broadcast %44 : vector<16x1xf32> to vector<16x32xf32>
    %46 = arith.mulf %41, %45 : vector<16x32xf32>
    %c0_27 = arith.constant 0 : index
    %c0_28 = arith.constant 0 : index
    %47 = vector.load %arg8[%c0_27, %c0_28] : memref<1x32xf32, #tpu.memory_space<vmem>>, vector<1x32xf32>
    %48 = vector.broadcast %47 : vector<1x32xf32> to vector<16x32xf32>
    %49 = arith.mulf %46, %48 : vector<16x32xf32>
    %c0_29 = arith.constant 0 : index
    %c0_30 = arith.constant 0 : index
    %50 = vector.load %arg9[%c0_29, %c0_30] : memref<1x32xf32, #tpu.memory_space<vmem>>, vector<1x32xf32>
    %51 = vector.broadcast %50 : vector<1x32xf32> to vector<16x32xf32>
    %52 = arith.addf %49, %51 : vector<16x32xf32>
    %c0_31 = arith.constant 0 : index
    %c0_32 = arith.constant 0 : index
    %53 = vector.load %arg29[%c0_31, %c0_32] : memref<16x32xf32, #tpu.memory_space<vmem>>, vector<16x32xf32>
    tpu.vector_store %arg29[%c0_31, %c0_32], %52 {strides = array<i32>} : memref<16x32xf32, #tpu.memory_space<vmem>>, vector<16x32xf32>,
    %cst_33 = arith.constant dense<0.000000e+00> : vector<32xf32>
    %54 = vector.multi_reduction <add>, %52, %cst_33 [0] : vector<16x32xf32> to vector<32xf32>
    %55 = vector.shape_cast %54 : vector<32xf32> to vector<1x32xf32>
    %cst_34 = arith.constant 1.600000e+01 : f32
    %56 = vector.broadcast %cst_34 : f32 to vector<1x32xf32>
    %57 = arith.divf %55, %56 : vector<1x32xf32>
    %c0_35 = arith.constant 0 : index
    %c0_36 = arith.constant 0 : index
    %58 = vector.load %arg31[%c0_35, %c0_36] : memref<1x32xf32, #tpu.memory_space<vmem>>, vector<1x32xf32>
    tpu.vector_store %arg31[%c0_35, %c0_36], %57 {strides = array<i32>} : memref<1x32xf32, #tpu.memory_space<vmem>>, vector<1x32xf32>,
    %c0_37 = arith.constant 0 : index
    %c0_38 = arith.constant 0 : index
    %59 = vector.load %arg10[%c0_37, %c0_38] : memref<32x16xbf16, #tpu.memory_space<vmem>>, vector<32x16xbf16>
    %60 = arith.truncf %52 : vector<16x32xf32> to vector<16x32xbf16>
    %cst_39 = arith.constant dense<0.000000e+00> : vector<16x16xf32>
    %61 = tpu.matmul %60, %59, %cst_39 {dimension_numbers = #tpu.dot_dimension_numbers<[1], [0], [0], [1], [0, 0, 1, 1], [], []>} : vector<16x32xbf16>, vector<32x16xbf16>, vector<16x16xf32> -> vector<16x16xf32>
    %c0_40 = arith.constant 0 : index
    %c0_41 = arith.constant 0 : index
    %62 = vector.load %arg11[%c0_40, %c0_41] : memref<1x16xf32, #tpu.memory_space<vmem>>, vector<1x16xf32>
    %63 = vector.broadcast %62 : vector<1x16xf32> to vector<16x16xf32>
    %64 = arith.addf %61, %63 : vector<16x16xf32>
    %c0_42 = arith.constant 0 : index
    %c0_43 = arith.constant 0 : index
    %65 = vector.load %arg12[%c0_42, %c0_43] : memref<32x16xbf16, #tpu.memory_space<vmem>>, vector<32x16xbf16>
    %66 = arith.truncf %52 : vector<16x32xf32> to vector<16x32xbf16>
    %cst_44 = arith.constant dense<0.000000e+00> : vector<16x16xf32>
    %67 = tpu.matmul %66, %65, %cst_44 {dimension_numbers = #tpu.dot_dimension_numbers<[1], [0], [0], [1], [0, 0, 1, 1], [], []>} : vector<16x32xbf16>, vector<32x16xbf16>, vector<16x16xf32> -> vector<16x16xf32>
    %c0_45 = arith.constant 0 : index
    %c0_46 = arith.constant 0 : index
    %68 = vector.load %arg13[%c0_45, %c0_46] : memref<1x16xf32, #tpu.memory_space<vmem>>, vector<1x16xf32>
    %69 = vector.broadcast %68 : vector<1x16xf32> to vector<16x16xf32>
    %70 = arith.addf %67, %69 : vector<16x16xf32>
    %c0_47 = arith.constant 0 : index
    %c0_48 = arith.constant 0 : index
    %71 = vector.load %arg27[%c0_47, %c0_48] : memref<16x16xf32, #tpu.memory_space<vmem>>, vector<16x16xf32>
    tpu.vector_store %arg27[%c0_47, %c0_48], %64 {strides = array<i32>} : memref<16x16xf32, #tpu.memory_space<vmem>>, vector<16x16xf32>,
    %c0_49 = arith.constant 0 : index
    %c0_50 = arith.constant 0 : index
    %72 = vector.load %arg28[%c0_49, %c0_50] : memref<16x16xf32, #tpu.memory_space<vmem>>, vector<16x16xf32>
    tpu.vector_store %arg28[%c0_49, %c0_50], %70 {strides = array<i32>} : memref<16x16xf32, #tpu.memory_space<vmem>>, vector<16x16xf32>,
    %c0_51 = arith.constant 0 : index
    %c0_52 = arith.constant 0 : index
    %73 = vector.load %arg20[%c0_51, %c0_52] : memref<16x32xbf16, #tpu.memory_space<vmem>>, vector<16x32xbf16>
    %74 = arith.truncf %64 : vector<16x16xf32> to vector<16x16xbf16>
    %cst_53 = arith.constant dense<0.000000e+00> : vector<16x32xf32>
    %75 = tpu.matmul %74, %73, %cst_53 {dimension_numbers = #tpu.dot_dimension_numbers<[1], [0], [0], [1], [0, 0, 1, 1], [], []>} : vector<16x16xbf16>, vector<16x32xbf16>, vector<16x32xf32> -> vector<16x32xf32>
    %c0_54 = arith.constant 0 : index
    %c0_55 = arith.constant 0 : index
    %76 = vector.load %arg21[%c0_54, %c0_55] : memref<1x32xf32, #tpu.memory_space<vmem>>, vector<1x32xf32>
    %77 = vector.broadcast %76 : vector<1x32xf32> to vector<16x32xf32>
    %78 = arith.addf %75, %77 : vector<16x32xf32>
    %cst_56 = arith.constant 0.000000e+00 : f32
    %79 = vector.broadcast %cst_56 : f32 to vector<16x32xf32>
    %80 = arith.maximumf %78, %79 : vector<16x32xf32>
    %c0_57 = arith.constant 0 : index
    %c0_58 = arith.constant 0 : index
    %81 = vector.load %arg22[%c0_57, %c0_58] : memref<32x32xbf16, #tpu.memory_space<vmem>>, vector<32x32xbf16>
    %82 = arith.truncf %80 : vector<16x32xf32> to vector<16x32xbf16>
    %cst_59 = arith.constant dense<0.000000e+00> : vector<16x32xf32>
    %83 = tpu.matmul %82, %81, %cst_59 {dimension_numbers = #tpu.dot_dimension_numbers<[1], [0], [0], [1], [0, 0, 1, 1], [], []>} : vector<16x32xbf16>, vector<32x32xbf16>, vector<16x32xf32> -> vector<16x32xf32>
    %c0_60 = arith.constant 0 : index
    %c0_61 = arith.constant 0 : index
    %84 = vector.load %arg23[%c0_60, %c0_61] : memref<1x32xf32, #tpu.memory_space<vmem>>, vector<1x32xf32>
    %85 = vector.broadcast %84 : vector<1x32xf32> to vector<16x32xf32>
    %86 = arith.addf %83, %85 : vector<16x32xf32>
    %c0_62 = arith.constant 0 : index
    %c0_63 = arith.constant 0 : index
    %87 = vector.load %arg32[%c0_62, %c0_63] : memref<16x32xf32, #tpu.memory_space<vmem>>, vector<16x32xf32>
    tpu.vector_store %arg32[%c0_62, %c0_63], %86 {strides = array<i32>} : memref<16x32xf32, #tpu.memory_space<vmem>>, vector<16x32xf32>,
    %c0_64 = arith.constant 0 : index
    %c0_65 = arith.constant 0 : index
    %88 = vector.load %arg14[%c0_64, %c0_65] : memref<16x32xbf16, #tpu.memory_space<vmem>>, vector<16x32xbf16>
    %89 = arith.truncf %64 : vector<16x16xf32> to vector<16x16xbf16>
    %cst_66 = arith.constant dense<0.000000e+00> : vector<16x32xf32>
    %90 = tpu.matmul %89, %88, %cst_66 {dimension_numbers = #tpu.dot_dimension_numbers<[1], [0], [0], [1], [0, 0, 1, 1], [], []>} : vector<16x16xbf16>, vector<16x32xbf16>, vector<16x32xf32> -> vector<16x32xf32>
    %c0_67 = arith.constant 0 : index
    %c0_68 = arith.constant 0 : index
    %91 = vector.load %arg15[%c0_67, %c0_68] : memref<1x32xf32, #tpu.memory_space<vmem>>, vector<1x32xf32>
    %92 = vector.broadcast %91 : vector<1x32xf32> to vector<16x32xf32>
    %93 = arith.addf %90, %92 : vector<16x32xf32>
    %cst_69 = arith.constant 0.000000e+00 : f32
    %94 = vector.broadcast %cst_69 : f32 to vector<16x32xf32>
    %95 = arith.maximumf %93, %94 : vector<16x32xf32>
    %c0_70 = arith.constant 0 : index
    %c0_71 = arith.constant 0 : index
    %96 = vector.load %arg16[%c0_70, %c0_71] : memref<32x32xbf16, #tpu.memory_space<vmem>>, vector<32x32xbf16>
    %97 = arith.truncf %95 : vector<16x32xf32> to vector<16x32xbf16>
    %cst_72 = arith.constant dense<0.000000e+00> : vector<16x32xf32>
    %98 = tpu.matmul %97, %96, %cst_72 {dimension_numbers = #tpu.dot_dimension_numbers<[1], [0], [0], [1], [0, 0, 1, 1], [], []>} : vector<16x32xbf16>, vector<32x32xbf16>, vector<16x32xf32> -> vector<16x32xf32>
    %c0_73 = arith.constant 0 : index
    %c0_74 = arith.constant 0 : index
    %99 = vector.load %arg17[%c0_73, %c0_74] : memref<1x32xf32, #tpu.memory_space<vmem>>, vector<1x32xf32>
    %100 = vector.broadcast %99 : vector<1x32xf32> to vector<16x32xf32>
    %101 = arith.addf %98, %100 : vector<16x32xf32>
    %cst_75 = arith.constant 0.000000e+00 : f32
    %102 = vector.broadcast %cst_75 : f32 to vector<16x32xf32>
    %103 = arith.maximumf %101, %102 : vector<16x32xf32>
    %c0_76 = arith.constant 0 : index
    %c0_77 = arith.constant 0 : index
    %104 = vector.load %arg18[%c0_76, %c0_77] : memref<32x16xbf16, #tpu.memory_space<vmem>>, vector<32x16xbf16>
    %105 = arith.truncf %103 : vector<16x32xf32> to vector<16x32xbf16>
    %cst_78 = arith.constant dense<0.000000e+00> : vector<16x16xf32>
    %106 = tpu.matmul %105, %104, %cst_78 {dimension_numbers = #tpu.dot_dimension_numbers<[1], [0], [0], [1], [0, 0, 1, 1], [], []>} : vector<16x32xbf16>, vector<32x16xbf16>, vector<16x16xf32> -> vector<16x16xf32>
    %c0_79 = arith.constant 0 : index
    %c0_80 = arith.constant 0 : index
    %107 = vector.load %arg19[%c0_79, %c0_80] : memref<1x16xf32, #tpu.memory_space<vmem>>, vector<1x16xf32>
    %108 = vector.broadcast %107 : vector<1x16xf32> to vector<16x16xf32>
    %109 = arith.addf %106, %108 : vector<16x16xf32>
    %c0_81 = arith.constant 0 : index
    %c0_82 = arith.constant 0 : index
    %110 = vector.load %arg30[%c0_81, %c0_82] : memref<16x16xf32, #tpu.memory_space<vmem>>, vector<16x16xf32>
    tpu.vector_store %arg30[%c0_81, %c0_82], %109 {strides = array<i32>} : memref<16x16xf32, #tpu.memory_space<vmem>>, vector<16x16xf32>,
    %c0_83 = arith.constant 0 : index
    %c0_84 = arith.constant 0 : index
    %111 = vector.load %arg24[%c0_83, %c0_84] : memref<32x32xbf16, #tpu.memory_space<vmem>>, vector<32x32xbf16>
    %112 = arith.truncf %95 : vector<16x32xf32> to vector<16x32xbf16>
    %cst_85 = arith.constant dense<0.000000e+00> : vector<16x32xf32>
    %113 = tpu.matmul %112, %111, %cst_85 {dimension_numbers = #tpu.dot_dimension_numbers<[1], [0], [0], [1], [0, 0, 1, 1], [], []>} : vector<16x32xbf16>, vector<32x32xbf16>, vector<16x32xf32> -> vector<16x32xf32>
    %c0_86 = arith.constant 0 : index
    %c0_87 = arith.constant 0 : index
    %114 = vector.load %arg26[%c0_86, %c0_87] : memref<1x32xf32, #tpu.memory_space<vmem>>, vector<1x32xf32>
    %115 = vector.broadcast %114 : vector<1x32xf32> to vector<16x32xf32>
    %116 = arith.addf %113, %115 : vector<16x32xf32>
    %c0_88 = arith.constant 0 : index
    %c0_89 = arith.constant 0 : index
    %117 = vector.load %arg33[%c0_88, %c0_89] : memref<16x32xf32, #tpu.memory_space<vmem>>, vector<16x32xf32>
    tpu.vector_store %arg33[%c0_88, %c0_89], %116 {strides = array<i32>} : memref<16x32xf32, #tpu.memory_space<vmem>>, vector<16x32xf32>,
    %c0_90 = arith.constant 0 : index
    %c0_91 = arith.constant 0 : index
    %118 = vector.load %arg25[%c0_90, %c0_91] : memref<32x32xbf16, #tpu.memory_space<vmem>>, vector<32x32xbf16>
    %119 = arith.truncf %95 : vector<16x32xf32> to vector<16x32xbf16>
    %cst_92 = arith.constant dense<0.000000e+00> : vector<16x32xf32>
    %120 = tpu.matmul %119, %118, %cst_92 {dimension_numbers = #tpu.dot_dimension_numbers<[1], [0], [0], [1], [0, 0, 1, 1], [], []>} : vector<16x32xbf16>, vector<32x32xbf16>, vector<16x32xf32> -> vector<16x32xf32>
    %c0_93 = arith.constant 0 : index
    %c0_94 = arith.constant 0 : index
    %121 = vector.load %arg34[%c0_93, %c0_94] : memref<16x32xf32, #tpu.memory_space<vmem>>, vector<16x32xf32>
    tpu.vector_store %arg34[%c0_93, %c0_94], %120 {strides = array<i32>} : memref<16x32xf32, #tpu.memory_space<vmem>>, vector<16x32xf32>,
    return
  }
}

module attributes {stable_mosaic.version = 11 : i64} {
  func.func @_edge_kernel(%arg0: i32, %arg1: memref<8x32xf32, #tpu.memory_space<vmem>>, %arg2: memref<16x32xf32, #tpu.memory_space<vmem>>, %arg3: memref<32x32xbf16, #tpu.memory_space<vmem>>, %arg4: memref<1x32xf32, #tpu.memory_space<vmem>>, %arg5: memref<32x128xbf16, #tpu.memory_space<vmem>>, %arg6: memref<1x128xf32, #tpu.memory_space<vmem>>, %arg7: memref<128x128xf32, #tpu.memory_space<vmem>>) attributes {dimension_semantics = [#tpu.dimension_semantics<parallel>], iteration_bounds = array<i64: 2>, scalar_prefetch = 0 : i64, scratch_operands = 0 : i64, tpu.core_type = #tpu.core_type<tc>, window_params = [{transform_indices = @transform_0, window_bounds = array<i64: 8, 32>}, {pipeline_mode = #tpu.pipeline_mode<synchronous>, transform_indices = @transform_1, window_bounds = array<i64: 16, 32>}, {pipeline_mode = #tpu.pipeline_mode<synchronous>, transform_indices = @transform_2, window_bounds = array<i64: 32, 32>}, {pipeline_mode = #tpu.pipeline_mode<synchronous>, transform_indices = @transform_3, window_bounds = array<i64: 1, 32>}, {pipeline_mode = #tpu.pipeline_mode<synchronous>, transform_indices = @transform_4, window_bounds = array<i64: 32, 128>}, {pipeline_mode = #tpu.pipeline_mode<synchronous>, transform_indices = @transform_5, window_bounds = array<i64: 1, 128>}, {transform_indices = @transform_6, window_bounds = array<i64: 128, 128>}]} {
    %c0 = arith.constant 0 : index
    %c0_0 = arith.constant 0 : index
    %0 = vector.load %arg1[%c0, %c0_0] : memref<8x32xf32, #tpu.memory_space<vmem>>, vector<8x32xf32>
    %1 = vector.shape_cast %0 : vector<8x32xf32> to vector<8x1x32xf32>
    %c0_1 = arith.constant 0 : index
    %c0_2 = arith.constant 0 : index
    %2 = vector.load %arg2[%c0_1, %c0_2] : memref<16x32xf32, #tpu.memory_space<vmem>>, vector<16x32xf32>
    %3 = vector.shape_cast %2 : vector<16x32xf32> to vector<1x16x32xf32>
    %4 = vector.broadcast %1 : vector<8x1x32xf32> to vector<8x16x32xf32>
    %5 = vector.broadcast %3 : vector<1x16x32xf32> to vector<8x16x32xf32>
    %6 = arith.addf %4, %5 : vector<8x16x32xf32>
    %cst = arith.constant 0.000000e+00 : f32
    %7 = vector.broadcast %cst : f32 to vector<8x16x32xf32>
    %8 = arith.maximumf %6, %7 : vector<8x16x32xf32>
    %9 = vector.shape_cast %8 : vector<8x16x32xf32> to vector<128x32xf32>
    %10 = arith.truncf %9 : vector<128x32xf32> to vector<128x32xbf16>
    %c0_3 = arith.constant 0 : index
    %c0_4 = arith.constant 0 : index
    %11 = vector.load %arg3[%c0_3, %c0_4] : memref<32x32xbf16, #tpu.memory_space<vmem>>, vector<32x32xbf16>
    %cst_5 = arith.constant dense<0.000000e+00> : vector<128x32xf32>
    %12 = tpu.matmul %10, %11, %cst_5 {dimension_numbers = #tpu.dot_dimension_numbers<[1], [0], [0], [1], [0, 0, 1, 1], [], []>} : vector<128x32xbf16>, vector<32x32xbf16>, vector<128x32xf32> -> vector<128x32xf32>
    %c0_6 = arith.constant 0 : index
    %c0_7 = arith.constant 0 : index
    %13 = vector.load %arg4[%c0_6, %c0_7] : memref<1x32xf32, #tpu.memory_space<vmem>>, vector<1x32xf32>
    %14 = vector.broadcast %13 : vector<1x32xf32> to vector<128x32xf32>
    %15 = arith.addf %12, %14 : vector<128x32xf32>
    %cst_8 = arith.constant 0.000000e+00 : f32
    %16 = vector.broadcast %cst_8 : f32 to vector<128x32xf32>
    %17 = arith.maximumf %15, %16 : vector<128x32xf32>
    %18 = arith.truncf %17 : vector<128x32xf32> to vector<128x32xbf16>
    %c0_9 = arith.constant 0 : index
    %c0_10 = arith.constant 0 : index
    %19 = vector.load %arg5[%c0_9, %c0_10] : memref<32x128xbf16, #tpu.memory_space<vmem>>, vector<32x128xbf16>
    %cst_11 = arith.constant dense<0.000000e+00> : vector<128x128xf32>
    %20 = tpu.matmul %18, %19, %cst_11 {dimension_numbers = #tpu.dot_dimension_numbers<[1], [0], [0], [1], [0, 0, 1, 1], [], []>} : vector<128x32xbf16>, vector<32x128xbf16>, vector<128x128xf32> -> vector<128x128xf32>
    %c0_12 = arith.constant 0 : index
    %c0_13 = arith.constant 0 : index
    %21 = vector.load %arg6[%c0_12, %c0_13] : memref<1x128xf32, #tpu.memory_space<vmem>>, vector<1x128xf32>
    %22 = vector.broadcast %21 : vector<1x128xf32> to vector<128x128xf32>
    %23 = arith.addf %20, %22 : vector<128x128xf32>
    %c0_14 = arith.constant 0 : index
    %c0_15 = arith.constant 0 : index
    %24 = vector.load %arg7[%c0_14, %c0_15] : memref<128x128xf32, #tpu.memory_space<vmem>>, vector<128x128xf32>
    tpu.vector_store %arg7[%c0_14, %c0_15], %23 {strides = array<i32>} : memref<128x128xf32, #tpu.memory_space<vmem>>, vector<128x128xf32>,
    return
  }
  func.func @transform_0(%arg0: i32) -> (i32, i32) {
    %c0_i32 = arith.constant 0 : i32
    %c0_i32_0 = arith.constant 0 : i32
    return %arg0, %c0_i32 : i32, i32
  }
  func.func @transform_1(%arg0: i32) -> (i32, i32) {
    %c0_i32 = arith.constant 0 : i32
    %c0_i32_0 = arith.constant 0 : i32
    %c0_i32_1 = arith.constant 0 : i32
    return %c0_i32, %c0_i32_0 : i32, i32
  }
  func.func @transform_2(%arg0: i32) -> (i32, i32) {
    %c0_i32 = arith.constant 0 : i32
    %c0_i32_0 = arith.constant 0 : i32
    %c0_i32_1 = arith.constant 0 : i32
    return %c0_i32, %c0_i32_0 : i32, i32
  }
  func.func @transform_3(%arg0: i32) -> (i32, i32) {
    %c0_i32 = arith.constant 0 : i32
    %c0_i32_0 = arith.constant 0 : i32
    %c0_i32_1 = arith.constant 0 : i32
    return %c0_i32, %c0_i32_0 : i32, i32
  }
  func.func @transform_4(%arg0: i32) -> (i32, i32) {
    %c0_i32 = arith.constant 0 : i32
    %c0_i32_0 = arith.constant 0 : i32
    %c0_i32_1 = arith.constant 0 : i32
    return %c0_i32, %c0_i32_0 : i32, i32
  }
  func.func @transform_5(%arg0: i32) -> (i32, i32) {
    %c0_i32 = arith.constant 0 : i32
    %c0_i32_0 = arith.constant 0 : i32
    %c0_i32_1 = arith.constant 0 : i32
    return %c0_i32, %c0_i32_0 : i32, i32
  }
  func.func @transform_6(%arg0: i32) -> (i32, i32) {
    %c0_i32 = arith.constant 0 : i32
    %c0_i32_0 = arith.constant 0 : i32
    return %arg0, %c0_i32 : i32, i32
  }
}

</mosaic_0001>

<llo_original>
// kernel: squeeze.1
$region0: #{squeeze.1}
  %s0 = inlined_call_operand.vmem [shape: f32[256], index: 0, kind: input, shape index: {}]
  %s1 = inlined_call_operand.hbm [shape: f32[16,16], index: 1, kind: output, shape index: {}]
  $region1: #{squeeze.1} parent=0
    #allocation0 [shape = 'u8[8192]{0}', space=vmem, size = 0x2000, scoped, tag = 'operand span for operand 1']
    #allocation1 [shape = 's32[1]{0}', space=sflag, size = 0x4, scoped, tag = 'scoped memory for squeeze.1']
    #allocation2 [shape = 'u8[4096]{0}', space=vmem, size = 0x1000, scoped, tag = 'scoped mem for input reshape']
    %2 = vsyncpa [#allocation1], 0
    %s4 = ssub.s32 4, 1
    %v5 = vld [vmem:[%s0] sm:%s4]
    %6 = vst [vmem:[#allocation2] sm:%s4] %v5
    %v7 = vld [vmem:[#allocation2] sm:$0x3]
    %vm8 = vcmask 130048
    %9 = vst.msk [vmem:[#allocation0] ss:$8 sm:$0x3] %vm8, %v7
    %v10 = vld [vmem:[#allocation2] sm:$0x3]
    %11 = vrot.lane.b32.xlu0 %v10, 112
    %v12 = vpop.permute.xlu0 %11
    %vm13 = vcmask 130048
    %s14 = scalar_lea.vmem [#allocation0], 1
    %15 = vst.msk [vmem:[%s14] ss:$8 sm:$0x3] %vm13, %v12
    %v16 = vld [vmem:[#allocation2] sm:$0x3]
    %17 = vrot.lane.b32.xlu0 %v16, 96
    %v18 = vpop.permute.xlu0 %17
    %vm19 = vcmask 130048
    %s20 = scalar_lea.vmem [#allocation0], 2
    %21 = vst.msk [vmem:[%s20] ss:$8 sm:$0x3] %vm19, %v18
    %v22 = vld [vmem:[#allocation2] sm:$0x3]
    %23 = vrot.lane.b32.xlu0 %v22, 80
    %v24 = vpop.permute.xlu0 %23
    %vm25 = vcmask 130048
    %s26 = scalar_lea.vmem [#allocation0], 3
    %27 = vst.msk [vmem:[%s26] ss:$8 sm:$0x3] %vm25, %v24
    %v28 = vld [vmem:[#allocation2] sm:$0x3]
    %29 = vrot.lane.b32.xlu0 %v28, 64
    %v30 = vpop.permute.xlu0 %29
    %vm31 = vcmask 130048
    %s32 = scalar_lea.vmem [#allocation0], 4
    %33 = vst.msk [vmem:[%s32] ss:$8 sm:$0x3] %vm31, %v30
    %v34 = vld [vmem:[#allocation2] sm:$0x3]
    %35 = vrot.lane.b32.xlu0 %v34, 48
    %v36 = vpop.permute.xlu0 %35
    %vm37 = vcmask 130048
    %s38 = scalar_lea.vmem [#allocation0], 5
    %39 = vst.msk [vmem:[%s38] ss:$8 sm:$0x3] %vm37, %v36
    %v40 = vld [vmem:[#allocation2] sm:$0x3]
    %41 = vrot.lane.b32.xlu0 %v40, 32
    %v42 = vpop.permute.xlu0 %41
    %vm43 = vcmask 130048
    %s44 = scalar_lea.vmem [#allocation0], 6
    %45 = vst.msk [vmem:[%s44] ss:$8 sm:$0x3] %vm43, %v42
    %v46 = vld [vmem:[#allocation2] sm:$0x3]
    %47 = vrot.lane.b32.xlu0 %v46, 16
    %v48 = vpop.permute.xlu0 %47
    %vm49 = vcmask 130048
    %s50 = scalar_lea.vmem [#allocation0], 7
    %51 = vst.msk [vmem:[%s50] ss:$8 sm:$0x3] %vm49, %v48
    %53 = vsyncadd [#allocation1], 0
    %s55 = sshll.u32 [#allocation0], 4
    %s56 = int_to_ptr.vmem [resolvable:$true] %s55
    %s57 = sshll.u32 %s1, 4
    %s58 = int_to_ptr.hbm [resolvable:$true] %s57
    %60 = dma.vmem_to_hbm [thread:$0]  %s56, 256, %s58, [#allocation1]
    %62 = dma.done [#allocation1], 256
    %63 = vsyncpa [#allocation1], 1

// kernel: graph_compression_forward.3
$region0: #{graph_compression_forward.3}
  #allocation0 [shape = 'u32[]', space=smem, size = 0x4, offset = 0x4, fixed_abs, tag = 'smem constant byte address 0x4 - core index']
  #allocation1 [shape = 'u32[72,128]{1,0:T(1,128)}', space=vmem, size = 0x9000, scoped, tag = 'internal scratch']
  %s0 = inlined_call_operand.vmem [shape: f32[16,32], index: 0, kind: input, shape index: {}]
  %s1 = inlined_call_operand.vmem [shape: f32[16,32], index: 1, kind: input, shape index: {}]
  %s2 = inlined_call_operand.vmem [shape: bf16[32,32], index: 2, kind: input, shape index: {}]
  %s3 = inlined_call_operand.vmem [shape: f32[1,32], index: 3, kind: input, shape index: {}]
  %s4 = inlined_call_operand.vmem [shape: bf16[32,128], index: 4, kind: input, shape index: {}]
  %s5 = inlined_call_operand.vmem [shape: f32[1,128], index: 5, kind: input, shape index: {}]
  %s6 = inlined_call_operand.vmem [shape: f32[256,128], index: 6, kind: output, shape index: {}]
  %s7 = sld [smem:[#allocation0]]
  $region57: #{graph_compression_forward.3} parent=0
    _
  %s9 = ssub.s32 1, %s7
  %s10 = scalar_select 0, %s9, %s7
  loop: start=0, step=1, limit=4
  $region2: #{graph_compression_forward.3} parent=0 // loop_pre_header
    _
  $region3: #{graph_compression_forward.3} parent=0 // loop_header
    %s12 = sphi 0, %s16
    %p13 = scmp.ge.s32.totalorder %s12, 4
    %s22 = sphi 0, %s24
    %s25 = sphi 0, %s22
    %s26 = sphi 0, %s25
    %s42 = sphi 0, %s26
    %s46 = sphi 0, %s46
    %s48 = sphi 0, %s46
    %s49 = sphi 0, %s48
    %s63 = sphi 0, %s49
    %s67 = sphi 0, %s67
    %s69 = sphi 0, %s67
    %s70 = sphi 0, %s69
    %s84 = sphi 0, %s70
    %s88 = sphi 0, %s88
    %s90 = sphi 0, %s88
    %s91 = sphi 0, %s90
    %s105 = sphi 0, %s91
    %s109 = sphi 0, %s109
    %s111 = sphi 0, %s109
    %s112 = sphi 0, %s111
    %s126 = sphi 0, %s112
    %s130 = sphi 0, %s130
    %s132 = sphi 0, %s130
    %s133 = sphi 0, %s132
    %s147 = sphi 0, %s133
    %s153 = sphi 0, %s155
    %s156 = sphi 0, %s153
    %s157 = sphi 0, %s156
    %s173 = sphi 0, %s157
  $region4: #{graph_compression_forward.3} parent=0 // loop_header_branch
    %15 = sbr.rel (%p13) target = $region8
  $region5: #{graph_compression_forward.3} parent=0 // loop_body
    %s17 = ssub.s32 %s12, 1
    %s18 = ssub.s32 %s12, 2
    %s19 = sadd.s32 %s12, 1
    %s20 = ssub.s32 %s12, %s19
    %p21 = scmp.eq.s32.totalorder %s20, 0
    %s23 = sadd.s32 %s22, 1
    %s24 = scalar_select %p21, %s22, %s23
    %p27 = pneg %p21
    %p28 = scmp.eq.s32.totalorder %s12, 1
    %p29 = por %p27, %p28
    %p30 = scmp.ne.s32.totalorder %s22, %s25
    %p31 = scmp.eq.s32.totalorder %s12, 0
    %p32 = por %p30, %p31
    %p33 = scmp.ne.s32.totalorder %s22, %s25
    %p34 = scmp.eq.s32.totalorder %s17, 1
    %p35 = por %p33, %p34
    %p36 = scmp.ne.s32.totalorder %s25, %s26
    %p37 = scmp.eq.s32.totalorder %s17, 0
    %p38 = por %p36, %p37
    %p39 = scmp.ne.s32.totalorder %s25, %s26
    %p40 = scmp.eq.s32.totalorder %s18, 1
    %p41 = por %p39, %p40
    %p43 = scmp.ne.s32.totalorder %s26, %s42
    %p44 = scmp.eq.s32.totalorder %s18, 0
    %p45 = por %p43, %p44
    %s47 = sadd.s32 %s46, 1
    %p50 = scmp.eq.s32.totalorder %s12, 1
    %p51 = scmp.ne.s32.totalorder %s46, %s48
    %p52 = scmp.eq.s32.totalorder %s12, 0
    %p53 = por %p51, %p52
    %p54 = scmp.ne.s32.totalorder %s46, %s48
    %p55 = scmp.eq.s32.totalorder %s17, 1
    %p56 = por %p54, %p55
    %p57 = scmp.ne.s32.totalorder %s48, %s49
    %p58 = scmp.eq.s32.totalorder %s17, 0
    %p59 = por %p57, %p58
    %p60 = scmp.ne.s32.totalorder %s48, %s49
    %p61 = scmp.eq.s32.totalorder %s18, 1
    %p62 = por %p60, %p61
    %p64 = scmp.ne.s32.totalorder %s49, %s63
    %p65 = scmp.eq.s32.totalorder %s18, 0
    %p66 = por %p64, %p65
    %s68 = sadd.s32 %s67, 1
    %p71 = scmp.eq.s32.totalorder %s12, 1
    %p72 = scmp.ne.s32.totalorder %s67, %s69
    %p73 = scmp.eq.s32.totalorder %s12, 0
    %p74 = por %p72, %p73
    %p75 = scmp.ne.s32.totalorder %s67, %s69
    %p76 = scmp.eq.s32.totalorder %s17, 1
    %p77 = por %p75, %p76
    %p78 = scmp.ne.s32.totalorder %s69, %s70
    %p79 = scmp.eq.s32.totalorder %s17, 0
    %p80 = por %p78, %p79
    %p81 = scmp.ne.s32.totalorder %s69, %s70
    %p82 = scmp.eq.s32.totalorder %s18, 1
    %p83 = por %p81, %p82
    %p85 = scmp.ne.s32.totalorder %s70, %s84
    %p86 = scmp.eq.s32.totalorder %s18, 0
    %p87 = por %p85, %p86
    %s89 = sadd.s32 %s88, 1
    %p92 = scmp.eq.s32.totalorder %s12, 1
    %p93 = scmp.ne.s32.totalorder %s88, %s90
    %p94 = scmp.eq.s32.totalorder %s12, 0
    %p95 = por %p93, %p94
    %p96 = scmp.ne.s32.totalorder %s88, %s90
    %p97 = scmp.eq.s32.totalorder %s17, 1
    %p98 = por %p96, %p97
    %p99 = scmp.ne.s32.totalorder %s90, %s91
    %p100 = scmp.eq.s32.totalorder %s17, 0
    %p101 = por %p99, %p100
    %p102 = scmp.ne.s32.totalorder %s90, %s91
    %p103 = scmp.eq.s32.totalorder %s18, 1
    %p104 = por %p102, %p103
    %p106 = scmp.ne.s32.totalorder %s91, %s105
    %p107 = scmp.eq.s32.totalorder %s18, 0
    %p108 = por %p106, %p107
    %s110 = sadd.s32 %s109, 1
    %p113 = scmp.eq.s32.totalorder %s12, 1
    %p114 = scmp.ne.s32.totalorder %s109, %s111
    %p115 = scmp.eq.s32.totalorder %s12, 0
    %p116 = por %p114, %p115
    %p117 = scmp.ne.s32.totalorder %s109, %s111
    %p118 = scmp.eq.s32.totalorder %s17, 1
    %p119 = por %p117, %p118
    %p120 = scmp.ne.s32.totalorder %s111, %s112
    %p121 = scmp.eq.s32.totalorder %s17, 0
    %p122 = por %p120, %p121
    %p123 = scmp.ne.s32.totalorder %s111, %s112
    %p124 = scmp.eq.s32.totalorder %s18, 1
    %p125 = por %p123, %p124
    %p127 = scmp.ne.s32.totalorder %s112, %s126
    %p128 = scmp.eq.s32.totalorder %s18, 0
    %p129 = por %p127, %p128
    %s131 = sadd.s32 %s130, 1
    %p134 = scmp.eq.s32.totalorder %s12, 1
    %p135 = scmp.ne.s32.totalorder %s130, %s132
    %p136 = scmp.eq.s32.totalorder %s12, 0
    %p137 = por %p135, %p136
    %p138 = scmp.ne.s32.totalorder %s130, %s132
    %p139 = scmp.eq.s32.totalorder %s17, 1
    %p140 = por %p138, %p139
    %p141 = scmp.ne.s32.totalorder %s132, %s133
    %p142 = scmp.eq.s32.totalorder %s17, 0
    %p143 = por %p141, %p142
    %p144 = scmp.ne.s32.totalorder %s132, %s133
    %p145 = scmp.eq.s32.totalorder %s18, 1
    %p146 = por %p144, %p145
    %p148 = scmp.ne.s32.totalorder %s133, %s147
    %p149 = scmp.eq.s32.totalorder %s18, 0
    %p150 = por %p148, %p149
    %s151 = ssub.s32 %s12, %s19
    %p152 = scmp.eq.s32.totalorder %s151, 0
    %s154 = sadd.s32 %s153, 1
    %s155 = scalar_select %p152, %s153, %s154
    %p158 = pneg %p152
    %p159 = scmp.eq.s32.totalorder %s12, 1
    %p160 = por %p158, %p159
    %p161 = scmp.ne.s32.totalorder %s153, %s156
    %p162 = scmp.eq.s32.totalorder %s12, 0
    %p163 = por %p161, %p162
    %p164 = scmp.ne.s32.totalorder %s153, %s156
    %p165 = scmp.eq.s32.totalorder %s17, 1
    %p166 = por %p164, %p165
    %p167 = scmp.ne.s32.totalorder %s156, %s157
    %p168 = scmp.eq.s32.totalorder %s17, 0
    %p169 = por %p167, %p168
    %p170 = scmp.ne.s32.totalorder %s156, %s157
    %p171 = scmp.eq.s32.totalorder %s18, 1
    %p172 = por %p170, %p171
    %p174 = scmp.ne.s32.totalorder %s157, %s173
    %p175 = scmp.eq.s32.totalorder %s18, 0
    %p176 = por %p174, %p175
    %p177 = scmp.le.s32.totalorder 1, %s12
    %p178 = scmp.lt.s32.totalorder %s12, 3
    %p179 = pnand %p177, %p178
    %p180 = pneg %p179
    // Predicated region
    $region9: #{graph_compression_forward.3} parent=5 // pred_check
      _
    $region10: #{graph_compression_forward.3} parent=5 // pred_check_branch
      %182 = sbr.rel (%p179) target = $region12
    $region11: #{graph_compression_forward.3} parent=5 // pred_region
      %s183 = ssub.s32 %s12, 1
      // Predicated region
      $region13: #{graph_compression_forward.3} parent=11 // pred_check
        %p184 = pneg %p59
      $region14: #{graph_compression_forward.3} parent=11 // pred_check_branch
        %186 = sbr.rel (%p184) target = $region16
      $region15: #{graph_compression_forward.3} parent=11 // pred_region
        _
      $region16: #{graph_compression_forward.3} parent=11 // pred_fallthru
        _
      // Predicated region
      $region17: #{graph_compression_forward.3} parent=11 // pred_check
        %p187 = pneg %p80
      $region18: #{graph_compression_forward.3} parent=11 // pred_check_branch
        %189 = sbr.rel (%p187) target = $region20
      $region19: #{graph_compression_forward.3} parent=11 // pred_region
        _
      $region20: #{graph_compression_forward.3} parent=11 // pred_fallthru
        _
      // Predicated region
      $region21: #{graph_compression_forward.3} parent=11 // pred_check
        %p190 = pneg %p101
      $region22: #{graph_compression_forward.3} parent=11 // pred_check_branch
        %192 = sbr.rel (%p190) target = $region24
      $region23: #{graph_compression_forward.3} parent=11 // pred_region
        _
      $region24: #{graph_compression_forward.3} parent=11 // pred_fallthru
        _
      // Predicated region
      $region25: #{graph_compression_forward.3} parent=11 // pred_check
        %p193 = pneg %p122
      $region26: #{graph_compression_forward.3} parent=11 // pred_check_branch
        %195 = sbr.rel (%p193) target = $region28
      $region27: #{graph_compression_forward.3} parent=11 // pred_region
        _
      $region28: #{graph_compression_forward.3} parent=11 // pred_fallthru
        _
      // Predicated region
      $region29: #{graph_compression_forward.3} parent=11 // pred_check
        %p196 = pneg %p143
      $region30: #{graph_compression_forward.3} parent=11 // pred_check_branch
        %198 = sbr.rel (%p196) target = $region32
      $region31: #{graph_compression_forward.3} parent=11 // pred_region
        _
      $region32: #{graph_compression_forward.3} parent=11 // pred_fallthru
        _
    $region12: #{graph_compression_forward.3} parent=5 // pred_fallthru
      _
    %p199 = scmp.lt.s32.totalorder %s12, 2
    // Predicated region
    $region33: #{graph_compression_forward.3} parent=5 // pred_check
      %p200 = pneg %p199
    $region34: #{graph_compression_forward.3} parent=5 // pred_check_branch
      %202 = sbr.rel (%p200) target = $region36
    $region35: #{graph_compression_forward.3} parent=5 // pred_region
      // Predicated region
      $region37: #{graph_compression_forward.3} parent=35 // pred_check
        %p203 = pneg %p32
      $region38: #{graph_compression_forward.3} parent=35 // pred_check_branch
        %205 = sbr.rel (%p203) target = $region40
      $region39: #{graph_compression_forward.3} parent=35 // pred_region
        %p206 = scmp.lt.s32.totalorder %s12, 1
        %s207 = scalar_select %p206, %s12, 1
        %s208 = smul.addr %s207, 8
        %s209 = scalar_lea.vmem %s0, %s208
      $region40: #{graph_compression_forward.3} parent=35 // pred_fallthru
        _
    $region36: #{graph_compression_forward.3} parent=5 // pred_fallthru
      _
    %p210 = scmp.le.s32.totalorder 1, %s12
    %p211 = scmp.lt.s32.totalorder %s12, 3
    %p212 = pnand %p210, %p211
    %p213 = pneg %p212
    // Predicated region
    $region41: #{graph_compression_forward.3} parent=5 // pred_check
      _
    $region42: #{graph_compression_forward.3} parent=5 // pred_check_branch
      %215 = sbr.rel (%p212) target = $region44
    $region43: #{graph_compression_forward.3} parent=5 // pred_region
      %s216 = ssub.s32 %s12, 1
      %p217 = scmp.lt.s32.totalorder %s17, 1
      %s218 = scalar_select %p217, %s17, 1
      %s219 = smul.addr %s218, 8
      %s220 = scalar_lea.vmem %s0, %s219
      %p221 = pneg %p38
      %p222 = pneg %p35
      %p223 = pneg %p59
      %p224 = pneg %p56
      %p225 = pneg %p80
      %p226 = pneg %p77
      %p227 = pneg %p101
      %p228 = pneg %p98
      %p229 = pneg %p122
      %p230 = pneg %p119
      %p231 = pneg %p143
      %p232 = pneg %p140
      %p233 = pneg %p169
      %p234 = pneg %p166
      %s235 = smul.u32 16, %s17
      %p236 = scmp.lt.s32.totalorder %s235, 31
      %s237 = scalar_select %p236, %s235, 31
      %s238 = smul.addr %s237, 8
      %s239 = scalar_lea.vmem %s6, %s238
      %p240 = scmp.lt.s32.totalorder %s17, 1
      %s241 = scalar_select %p240, %s17, 1
      %s242 = smul.addr %s241, 8
      %s243 = scalar_lea.vmem %s0, %s242
      %s244 = smul.u32 16, %s17
      %p245 = scmp.lt.s32.totalorder %s244, 31
      %s246 = scalar_select %p245, %s244, 31
      %s247 = smul.addr %s246, 8
      %s248 = scalar_lea.vmem %s6, %s247
      %s249 = smul.u32 16, %s17
      %v251 = vld [vmem:[%s243] sm:$0xff]
      %v253 = vrot.slane %v251, 1
      %v254 = vrot.slane %v251, 2
      %v255 = vrot.slane %v251, 3
      %v256 = vrot.slane %v251, 4
      %v257 = vrot.slane %v251, 5
      %v258 = vrot.slane %v251, 6
      %v259 = vrot.slane %v251, 7
      %v260 = vld [vmem:[%s1] sm:$0xff]
      %v261 = vld [vmem:[%s1 + $0x8] sm:$0xff]
      %v262 = vperm.slane %v251, 0
      %v263 = vperm.slane %v253, 0
      %v264 = vperm.slane %v254, 0
      %v265 = vperm.slane %v255, 0
      %v266 = vperm.slane %v256, 0
      %v267 = vperm.slane %v257, 0
      %v268 = vperm.slane %v258, 0
      %v269 = vperm.slane %v259, 0
      %v278 = vadd.f32 %v262, %v260
      %v279 = vadd.f32 %v262, %v261
      %v280 = vadd.f32 %v263, %v260
      %v281 = vadd.f32 %v263, %v261
      %v282 = vadd.f32 %v264, %v260
      %v283 = vadd.f32 %v264, %v261
      %v284 = vadd.f32 %v265, %v260
      %v285 = vadd.f32 %v265, %v261
      %v286 = vadd.f32 %v266, %v260
      %v287 = vadd.f32 %v266, %v261
      %v288 = vadd.f32 %v267, %v260
      %v289 = vadd.f32 %v267, %v261
      %v290 = vadd.f32 %v268, %v260
      %v291 = vadd.f32 %v268, %v261
      %v292 = vadd.f32 %v269, %v260
      %v293 = vadd.f32 %v269, %v261
      %v294 = vmax.f32 %v278, 0.0
      %v295 = vmax.f32 %v279, 0.0
      %v296 = vmax.f32 %v280, 0.0
      %v297 = vmax.f32 %v281, 0.0
      %v298 = vmax.f32 %v282, 0.0
      %v299 = vmax.f32 %v283, 0.0
      %v300 = vmax.f32 %v284, 0.0
      %v301 = vmax.f32 %v285, 0.0
      %v302 = vmax.f32 %v286, 0.0
      %v303 = vmax.f32 %v287, 0.0
      %v304 = vmax.f32 %v288, 0.0
      %v305 = vmax.f32 %v289, 0.0
      %v306 = vmax.f32 %v290, 0.0
      %v307 = vmax.f32 %v291, 0.0
      %v308 = vmax.f32 %v292, 0.0
      %v309 = vmax.f32 %v293, 0.0
      %v310 = vpack.c.bf16 %v295, %v294
      %v311 = vpack.c.bf16 %v297, %v296
      %v312 = vpack.c.bf16 %v299, %v298
      %v313 = vpack.c.bf16 %v301, %v300
      %v314 = vpack.c.bf16 %v303, %v302
      %v315 = vpack.c.bf16 %v305, %v304
      %v316 = vpack.c.bf16 %v307, %v306
      %v317 = vpack.c.bf16 %v309, %v308
      %v318 = vld [vmem:[%s2] sm:$0xf]
      %v319 = vld [vmem:[%s2 + $0x4] sm:$0xf]
      %v320 = vld [vmem:[%s2 + $0x8] sm:$0xf]
      %v321 = vld [vmem:[%s2 + $0xc] sm:$0xf]
      %v322 = vld [vmem:[%s3] sm:$0x1]
      %v324 = vperm.slane %v322, 0
      %v330 = vunpack.c.l.b16 %v318
      %v331 = vunpack.c.l.b16 %v319
      %v332 = vunpack.c.l.b16 %v320
      %v333 = vunpack.c.l.b16 %v321
      %v334 = vpack.c.b16 %v331, %v330
      %v335 = vpack.c.b16 %v333, %v332
      %vm338 = vcmask 261120
      %v340 = vsel %vm338, %v310, 0
      %v343 = vsel %vm338, %v311, 0
      %v346 = vsel %vm338, %v312, 0
      %v349 = vsel %vm338, %v313, 0
      %v352 = vsel %vm338, %v314, 0
      %v355 = vsel %vm338, %v315, 0
      %v358 = vsel %vm338, %v316, 0
      %v361 = vsel %vm338, %v317, 0
      %363 = vmatpush.bf16.msra.mxu0 0
      %364 = vmatpush.bf16.msra.mxu0 0
      %365 = vmatpush.bf16.msra.mxu0 0
      %366 = vmatpush.bf16.msra.mxu0 0
      %367 = vmatpush.bf16.msra.mxu0 0
      %368 = vmatpush.bf16.msra.mxu0 0
      %369 = vmatpush.bf16.msra.mxu0 %v335
      %370 = vmatpush.bf16.msra.mxu0 %v334
      %371 = vmatmul.bf16.gmra.mxu0 %v340
      %v372 = vpop.f32.mrf.mxu0
      %v373 = vadd.f32 %v324, %v372
      %v374 = vpop.f32.mrf.mxu0
      %v375 = vadd.f32 %v324, %v374
      %376 = vmatmul.bf16.gmra.mxu0 %v343
      %v377 = vpop.f32.mrf.mxu0
      %v378 = vadd.f32 %v324, %v377
      %v379 = vpop.f32.mrf.mxu0
      %v380 = vadd.f32 %v324, %v379
      %381 = vmatmul.bf16.gmra.mxu0 %v346
      %v382 = vpop.f32.mrf.mxu0
      %v383 = vadd.f32 %v324, %v382
      %v384 = vpop.f32.mrf.mxu0
      %v385 = vadd.f32 %v324, %v384
      %386 = vmatmul.bf16.gmra.mxu0 %v349
      %v387 = vpop.f32.mrf.mxu0
      %v388 = vadd.f32 %v324, %v387
      %v389 = vpop.f32.mrf.mxu0
      %v390 = vadd.f32 %v324, %v389
      %391 = vmatmul.bf16.gmra.mxu0 %v352
      %v392 = vpop.f32.mrf.mxu0
      %v393 = vadd.f32 %v324, %v392
      %v394 = vpop.f32.mrf.mxu0
      %v395 = vadd.f32 %v324, %v394
      %396 = vmatmul.bf16.gmra.mxu0 %v355
      %v397 = vpop.f32.mrf.mxu0
      %v398 = vadd.f32 %v324, %v397
      %v399 = vpop.f32.mrf.mxu0
      %v400 = vadd.f32 %v324, %v399
      %401 = vmatmul.bf16.gmra.mxu0 %v358
      %v402 = vpop.f32.mrf.mxu0
      %v403 = vadd.f32 %v324, %v402
      %v404 = vpop.f32.mrf.mxu0
      %v405 = vadd.f32 %v324, %v404
      %406 = vmatmul.bf16.gmra.mxu0 %v361
      %v407 = vpop.f32.mrf.mxu0
      %v408 = vadd.f32 %v324, %v407
      %v409 = vpop.f32.mrf.mxu0
      %v410 = vadd.f32 %v324, %v409
      %411 = vdwg.mxu0
      %v412 = vmax.f32 %v373, 0.0
      %v413 = vmax.f32 %v375, 0.0
      %v414 = vmax.f32 %v378, 0.0
      %v415 = vmax.f32 %v380, 0.0
      %v416 = vmax.f32 %v383, 0.0
      %v417 = vmax.f32 %v385, 0.0
      %v418 = vmax.f32 %v388, 0.0
      %v419 = vmax.f32 %v390, 0.0
      %v420 = vmax.f32 %v393, 0.0
      %v421 = vmax.f32 %v395, 0.0
      %v422 = vmax.f32 %v398, 0.0
      %v423 = vmax.f32 %v400, 0.0
      %v424 = vmax.f32 %v403, 0.0
      %v425 = vmax.f32 %v405, 0.0
      %v426 = vmax.f32 %v408, 0.0
      %v427 = vmax.f32 %v410, 0.0
      %v428 = vpack.c.bf16 %v413, %v412
      %v429 = vpack.c.bf16 %v415, %v414
      %v430 = vpack.c.bf16 %v417, %v416
      %v431 = vpack.c.bf16 %v419, %v418
      %v432 = vpack.c.bf16 %v421, %v420
      %v433 = vpack.c.bf16 %v423, %v422
      %v434 = vpack.c.bf16 %v425, %v424
      %v435 = vpack.c.bf16 %v427, %v426
      %v436 = vld [vmem:[%s4] sm:$0xf]
      %v437 = vld [vmem:[%s4 + $0x4] sm:$0xf]
      %v438 = vld [vmem:[%s4 + $0x8] sm:$0xf]
      %v439 = vld [vmem:[%s4 + $0xc] sm:$0xf]
      %v440 = vld [vmem:[%s5] sm:$0x1]
      %v442 = vperm.slane %v440, 0
      %v448 = vunpack.c.l.b16 %v436
      %v449 = vunpack.c.l.b16 %v437
      %v450 = vunpack.c.l.b16 %v438
      %v451 = vunpack.c.l.b16 %v439
      %v452 = vpack.c.b16 %v449, %v448
      %v453 = vpack.c.b16 %v451, %v450
      %v457 = vsel %vm338, %v428, 0
      %v460 = vsel %vm338, %v429, 0
      %v463 = vsel %vm338, %v430, 0
      %v466 = vsel %vm338, %v431, 0
      %v469 = vsel %vm338, %v432, 0
      %v472 = vsel %vm338, %v433, 0
      %v475 = vsel %vm338, %v434, 0
      %v478 = vsel %vm338, %v435, 0
      %480 = vmatpush.bf16.msra.mxu0 0
      %481 = vmatpush.bf16.msra.mxu0 0
      %482 = vmatpush.bf16.msra.mxu0 0
      %483 = vmatpush.bf16.msra.mxu0 0
      %484 = vmatpush.bf16.msra.mxu0 0
      %485 = vmatpush.bf16.msra.mxu0 0
      %486 = vmatpush.bf16.msra.mxu0 %v453
      %487 = vmatpush.bf16.msra.mxu0 %v452
      %488 = vmatmul.bf16.gmra.mxu0 %v457
      %v489 = vpop.f32.mrf.mxu0
      %v490 = vadd.f32 %v442, %v489
      %v491 = vpop.f32.mrf.mxu0
      %v492 = vadd.f32 %v442, %v491
      %493 = vmatmul.bf16.gmra.mxu0 %v460
      %v494 = vpop.f32.mrf.mxu0
      %v495 = vadd.f32 %v442, %v494
      %v496 = vpop.f32.mrf.mxu0
      %v497 = vadd.f32 %v442, %v496
      %498 = vmatmul.bf16.gmra.mxu0 %v463
      %v499 = vpop.f32.mrf.mxu0
      %v500 = vadd.f32 %v442, %v499
      %v501 = vpop.f32.mrf.mxu0
      %v502 = vadd.f32 %v442, %v501
      %503 = vmatmul.bf16.gmra.mxu0 %v466
      %v504 = vpop.f32.mrf.mxu0
      %v505 = vadd.f32 %v442, %v504
      %v506 = vpop.f32.mrf.mxu0
      %v507 = vadd.f32 %v442, %v506
      %508 = vmatmul.bf16.gmra.mxu0 %v469
      %v509 = vpop.f32.mrf.mxu0
      %v510 = vadd.f32 %v442, %v509
      %v511 = vpop.f32.mrf.mxu0
      %v512 = vadd.f32 %v442, %v511
      %513 = vmatmul.bf16.gmra.mxu0 %v472
      %v514 = vpop.f32.mrf.mxu0
      %v515 = vadd.f32 %v442, %v514
      %v516 = vpop.f32.mrf.mxu0
      %v517 = vadd.f32 %v442, %v516
      %518 = vmatmul.bf16.gmra.mxu0 %v475
      %v519 = vpop.f32.mrf.mxu0
      %v520 = vadd.f32 %v442, %v519
      %v521 = vpop.f32.mrf.mxu0
      %v522 = vadd.f32 %v442, %v521
      %523 = vmatmul.bf16.gmra.mxu0 %v478
      %v524 = vpop.f32.mrf.mxu0
      %v525 = vadd.f32 %v442, %v524
      %v526 = vpop.f32.mrf.mxu0
      %v527 = vadd.f32 %v442, %v526
      %528 = vdwg.mxu0
      %529 = vst [vmem:[%s248] sm:$0xff] %v490
      %530 = vst [vmem:[%s248 + $0x8] sm:$0xff] %v492
      %531 = vst [vmem:[%s248 + $0x10] sm:$0xff] %v495
      %532 = vst [vmem:[%s248 + $0x18] sm:$0xff] %v497
      %533 = vst [vmem:[%s248 + $0x20] sm:$0xff] %v500
      %534 = vst [vmem:[%s248 + $0x28] sm:$0xff] %v502
      %535 = vst [vmem:[%s248 + $0x30] sm:$0xff] %v505
      %536 = vst [vmem:[%s248 + $0x38] sm:$0xff] %v507
      %537 = vst [vmem:[%s248 + $0x40] sm:$0xff] %v510
      %538 = vst [vmem:[%s248 + $0x48] sm:$0xff] %v512
      %539 = vst [vmem:[%s248 + $0x50] sm:$0xff] %v515
      %540 = vst [vmem:[%s248 + $0x58] sm:$0xff] %v517
      %541 = vst [vmem:[%s248 + $0x60] sm:$0xff] %v520
      %542 = vst [vmem:[%s248 + $0x68] sm:$0xff] %v522
      %543 = vst [vmem:[%s248 + $0x70] sm:$0xff] %v525
      %544 = vst [vmem:[%s248 + $0x78] sm:$0xff] %v527
      %s545 = smul.u32 16, %s17
      %p546 = scmp.lt.s32.totalorder %s545, 31
      %s547 = scalar_select %p546, %s545, 31
      %s548 = smul.addr %s547, 8
      %s549 = scalar_lea.vmem %s6, %s548
      // Predicated region
      $region45: #{graph_compression_forward.3} parent=43 // pred_check
        %p550 = pneg %p166
      $region46: #{graph_compression_forward.3} parent=43 // pred_check_branch
        %552 = sbr.rel (%p550) target = $region48
      $region47: #{graph_compression_forward.3} parent=43 // pred_region
        %s553 = smul.u32 16, %s17
      $region48: #{graph_compression_forward.3} parent=43 // pred_fallthru
        _
    $region44: #{graph_compression_forward.3} parent=5 // pred_fallthru
      _
    %p554 = scmp.le.s32.totalorder 2, %s12
    // Predicated region
    $region49: #{graph_compression_forward.3} parent=5 // pred_check
      %p555 = pneg %p554
    $region50: #{graph_compression_forward.3} parent=5 // pred_check_branch
      %557 = sbr.rel (%p555) target = $region52
    $region51: #{graph_compression_forward.3} parent=5 // pred_region
      %s558 = ssub.s32 %s12, 2
      // Predicated region
      $region53: #{graph_compression_forward.3} parent=51 // pred_check
        %p559 = pneg %p172
      $region54: #{graph_compression_forward.3} parent=51 // pred_check_branch
        %561 = sbr.rel (%p559) target = $region56
      $region55: #{graph_compression_forward.3} parent=51 // pred_region
        %s562 = smul.u32 16, %s18
        %p563 = scmp.lt.s32.totalorder %s562, 31
        %s564 = scalar_select %p563, %s562, 31
        %s565 = smul.addr %s564, 8
        %s566 = scalar_lea.vmem %s6, %s565
      $region56: #{graph_compression_forward.3} parent=51 // pred_fallthru
        _
    $region52: #{graph_compression_forward.3} parent=5 // pred_fallthru
      _
  $region6: #{graph_compression_forward.3} parent=0 // loop_footer
    %s16 = sadd.s32 1, %s12
  $region7: #{graph_compression_forward.3} parent=0 // loop_footer_branch
    %11 = sbr.rel target = $region3
  $region8: #{graph_compression_forward.3} parent=0 // loop_exit
    _

// kernel: graph_compression_forward.2
$region0: #{graph_compression_forward.2}
  #allocation0 [shape = 'u32[]', space=smem, size = 0x4, offset = 0x4, fixed_abs, tag = 'smem constant byte address 0x4 - core index']
  #allocation1 [shape = 'u32[72,128]{1,0:T(1,128)}', space=vmem, size = 0x9000, scoped, tag = 'internal scratch']
  %s0 = inlined_call_operand.smem [shape: u32[35], index: -1, kind: input, shape index: {}]
  %s1 = sld [smem:[%s0]]
  %s2 = scalar_lea.smem %s0, 1
  %s3 = sld [smem:[%s2]]
  %s4 = scalar_lea.smem %s0, 2
  %s5 = sld [smem:[%s4]]
  %s6 = scalar_lea.smem %s0, 3
  %s7 = sld [smem:[%s6]]
  %s8 = scalar_lea.smem %s0, 4
  %s9 = sld [smem:[%s8]]
  %s10 = scalar_lea.smem %s0, 5
  %s11 = sld [smem:[%s10]]
  %s12 = scalar_lea.smem %s0, 6
  %s13 = sld [smem:[%s12]]
  %s14 = scalar_lea.smem %s0, 7
  %s15 = sld [smem:[%s14]]
  %s16 = scalar_lea.smem %s0, 8
  %s17 = sld [smem:[%s16]]
  %s18 = scalar_lea.smem %s0, 9
  %s19 = sld [smem:[%s18]]
  %s20 = scalar_lea.smem %s0, 10
  %s21 = sld [smem:[%s20]]
  %s22 = scalar_lea.smem %s0, 11
  %s23 = sld [smem:[%s22]]
  %s24 = scalar_lea.smem %s0, 12
  %s25 = sld [smem:[%s24]]
  %s26 = scalar_lea.smem %s0, 13
  %s27 = sld [smem:[%s26]]
  %s28 = scalar_lea.smem %s0, 14
  %s29 = sld [smem:[%s28]]
  %s30 = scalar_lea.smem %s0, 15
  %s31 = sld [smem:[%s30]]
  %s32 = scalar_lea.smem %s0, 16
  %s33 = sld [smem:[%s32]]
  %s34 = scalar_lea.smem %s0, 17
  %s35 = sld [smem:[%s34]]
  %s36 = scalar_lea.smem %s0, 18
  %s37 = sld [smem:[%s36]]
  %s38 = scalar_lea.smem %s0, 19
  %s39 = sld [smem:[%s38]]
  %s40 = scalar_lea.smem %s0, 20
  %s41 = sld [smem:[%s40]]
  %s42 = scalar_lea.smem %s0, 21
  %s43 = sld [smem:[%s42]]
  %s44 = scalar_lea.smem %s0, 22
  %s45 = sld [smem:[%s44]]
  %s46 = scalar_lea.smem %s0, 23
  %s47 = sld [smem:[%s46]]
  %s48 = scalar_lea.smem %s0, 24
  %s49 = sld [smem:[%s48]]
  %s50 = scalar_lea.smem %s0, 25
  %s51 = sld [smem:[%s50]]
  %s52 = scalar_lea.smem %s0, 26
  %s53 = sld [smem:[%s52]]
  %s54 = scalar_lea.smem %s0, 27
  %s55 = sld [smem:[%s54]]
  %s56 = scalar_lea.smem %s0, 28
  %s57 = sld [smem:[%s56]]
  %s58 = scalar_lea.smem %s0, 29
  %s59 = sld [smem:[%s58]]
  %s60 = scalar_lea.smem %s0, 30
  %s61 = sld [smem:[%s60]]
  %s62 = scalar_lea.smem %s0, 31
  %s63 = sld [smem:[%s62]]
  %s64 = scalar_lea.smem %s0, 32
  %s65 = sld [smem:[%s64]]
  %s66 = scalar_lea.smem %s0, 33
  %s67 = sld [smem:[%s66]]
  %s68 = scalar_lea.smem %s0, 34
  %s69 = sld [smem:[%s68]]
  %70 = xla_tuple %s55, %s57, %s59, %s61, %s63, %s65, %s67, %s69
  %s71 = sld [smem:[#allocation0]]
  $region234: #{graph_compression_forward.2} parent=0
    _
  %s73 = ssub.s32 1, %s71
  %s74 = scalar_select 0, %s73, %s71
  $region1: #{graph_compression_forward.2} parent=0
    #allocation2 [shape = 'u8[512]{0}', space=vmem, size = 0x400, scoped, tag = 'input window, operand 3, single buffered']
    #allocation3 [shape = 's32[1]{0}', space=sflag, size = 0x4, scoped, tag = 'scoped memory for graph_compression_forward.2']
    #allocation4 [shape = 's32[1]{0}', space=sflag, size = 0x4, scoped, tag = 'scoped memory for graph_compression_forward.2']
    #allocation5 [shape = 'u8[512]{0}', space=vmem, size = 0x400, scoped, tag = 'input window, operand 5, single buffered']
    #allocation6 [shape = 's32[1]{0}', space=sflag, size = 0x4, scoped, tag = 'scoped memory for graph_compression_forward.2']
    #allocation7 [shape = 'u8[512]{0}', space=vmem, size = 0x400, scoped, tag = 'input window, operand 7, single buffered']
    #allocation8 [shape = 'u8[512]{0}', space=vmem, size = 0x400, scoped, tag = 'input window, operand 9, single buffered']
    #allocation9 [shape = 's32[1]{0}', space=sflag, size = 0x4, scoped, tag = 'scoped memory for graph_compression_forward.2']
    #allocation10 [shape = 'u8[512]{0}', space=vmem, size = 0x400, scoped, tag = 'input window, operand 11, single buffered']
    #allocation11 [shape = 'u8[512]{0}', space=vmem, size = 0x400, scoped, tag = 'input window, operand 13, single buffered']
    #allocation12 [shape = 's32[1]{0}', space=sflag, size = 0x4, scoped, tag = 'scoped memory for graph_compression_forward.2']
    #allocation13 [shape = 'u8[512]{0}', space=vmem, size = 0x400, scoped, tag = 'input window, operand 15, single buffered']
    #allocation14 [shape = 'u8[512]{0}', space=vmem, size = 0x400, scoped, tag = 'input window, operand 17, single buffered']
    #allocation15 [shape = 's32[1]{0}', space=sflag, size = 0x4, scoped, tag = 'scoped memory for graph_compression_forward.2']
    #allocation16 [shape = 'u8[512]{0}', space=vmem, size = 0x400, scoped, tag = 'input window, operand 19, single buffered']
    #allocation17 [shape = 'u8[4096]{0}', space=vmem, size = 0x1000, scoped, tag = 'input window, operand 20, single buffered']
    #allocation18 [shape = 's32[1]{0}', space=sflag, size = 0x4, scoped, tag = 'scoped memory for graph_compression_forward.2']
    #allocation19 [shape = 'u8[512]{0}', space=vmem, size = 0x400, scoped, tag = 'input window, operand 21, single buffered']
    #allocation20 [shape = 'u8[512]{0}', space=vmem, size = 0x400, scoped, tag = 'input window, operand 23, single buffered']
    #allocation21 [shape = 's32[1]{0}', space=sflag, size = 0x4, scoped, tag = 'scoped memory for graph_compression_forward.2']
    #allocation22 [shape = 'u8[8192]{0}', space=vmem, size = 0x2000, scoped, tag = 'input window, operand 24, single buffered']
    #allocation23 [shape = 'u8[8192]{0}', space=vmem, size = 0x2000, scoped, tag = 'input window, operand 25, single buffered']
    #allocation24 [shape = 's32[1]{0}', space=sflag, size = 0x4, scoped, tag = 'scoped memory for graph_compression_forward.2']
    #allocation25 [shape = 'u8[512]{0}', space=vmem, size = 0x400, scoped, tag = 'input window, operand 26, single buffered']
    #allocation26 [shape = 'u8[8192]{0}', space=vmem, size = 0x2000, scoped, tag = 'output window, operand 1, single buffered']
    #allocation27 [shape = 'u8[8192]{0}', space=vmem, size = 0x2000, scoped, tag = 'output window, operand 2, single buffered']
    #allocation28 [shape = 's32[1]{0}', space=sflag, size = 0x4, scoped, tag = 'scoped memory for graph_compression_forward.2']
    #allocation29 [shape = 'u8[8192]{0}', space=vmem, size = 0x2000, scoped, tag = 'output window, operand 3, single buffered']
    #allocation30 [shape = 'u8[512]{0}', space=vmem, size = 0x400, scoped, tag = 'output window, operand 4, single buffered']
    #allocation31 [shape = 's32[1]{0}', space=sflag, size = 0x4, scoped, tag = 'scoped memory for graph_compression_forward.2']
    #allocation32 [shape = 'u8[8192]{0}', space=vmem, size = 0x2000, scoped, tag = 'output window, operand 5, single buffered']
    %75 = vsyncpa [#allocation3], 0
    %76 = vsyncpa [#allocation6], 0
    %77 = vsyncpa [#allocation9], 0
    %78 = vsyncpa [#allocation12], 0
    %79 = vsyncpa [#allocation15], 0
    %80 = vsyncpa [#allocation18], 0
    %81 = vsyncpa [#allocation21], 0
    %82 = vsyncpa [#allocation24], 0
    %83 = vsyncpa [#allocation4], 0
    %84 = vsyncpa [#allocation28], 0
    %85 = vsyncpa [#allocation31], 0
    // Predicated region
    $region2: #{graph_compression_forward.2} parent=1 // pred_check
      _
    $region3: #{graph_compression_forward.2} parent=1 // pred_check_branch
      %87 = sbr.rel (0) target = $region5
    $region4: #{graph_compression_forward.2} parent=1 // pred_region
      _
    $region5: #{graph_compression_forward.2} parent=1 // pred_fallthru
      _
    // Predicated region
    $region6: #{graph_compression_forward.2} parent=1 // pred_check
      _
    $region7: #{graph_compression_forward.2} parent=1 // pred_check_branch
      %89 = sbr.rel (0) target = $region9
    $region8: #{graph_compression_forward.2} parent=1 // pred_region
      _
    $region9: #{graph_compression_forward.2} parent=1 // pred_fallthru
      _
    // Predicated region
    $region10: #{graph_compression_forward.2} parent=1 // pred_check
      _
    $region11: #{graph_compression_forward.2} parent=1 // pred_check_branch
      %91 = sbr.rel (0) target = $region13
    $region12: #{graph_compression_forward.2} parent=1 // pred_region
      _
    $region13: #{graph_compression_forward.2} parent=1 // pred_fallthru
      _
    // Predicated region
    $region14: #{graph_compression_forward.2} parent=1 // pred_check
      _
    $region15: #{graph_compression_forward.2} parent=1 // pred_check_branch
      %93 = sbr.rel (0) target = $region17
    $region16: #{graph_compression_forward.2} parent=1 // pred_region
      %95 = vsyncadd [#allocation3], 0
      %s97 = sshll.u32 %s7, 4
      %s98 = int_to_ptr.hbm [resolvable:$true] %s97
      %s99 = sshll.u32 [#allocation2], 4
      %s100 = int_to_ptr.vmem [resolvable:$true] %s99
      %102 = dma.hbm_to_vmem [thread:$0]  %s98, 16, %s100, [#allocation3]
    $region17: #{graph_compression_forward.2} parent=1 // pred_fallthru
      _
    // Predicated region
    $region18: #{graph_compression_forward.2} parent=1 // pred_check
      _
    $region19: #{graph_compression_forward.2} parent=1 // pred_check_branch
      %104 = sbr.rel (0) target = $region21
    $region20: #{graph_compression_forward.2} parent=1 // pred_region
      _
    $region21: #{graph_compression_forward.2} parent=1 // pred_fallthru
      _
    // Predicated region
    $region22: #{graph_compression_forward.2} parent=1 // pred_check
      _
    $region23: #{graph_compression_forward.2} parent=1 // pred_check_branch
      %106 = sbr.rel (0) target = $region25
    $region24: #{graph_compression_forward.2} parent=1 // pred_region
      %108 = vsyncadd [#allocation6], 0
      %s110 = sshll.u32 %s11, 4
      %s111 = int_to_ptr.hbm [resolvable:$true] %s110
      %s112 = sshll.u32 [#allocation5], 4
      %s113 = int_to_ptr.vmem [resolvable:$true] %s112
      %115 = dma.hbm_to_vmem [thread:$0]  %s111, 16, %s113, [#allocation6]
    $region25: #{graph_compression_forward.2} parent=1 // pred_fallthru
      _
    // Predicated region
    $region26: #{graph_compression_forward.2} parent=1 // pred_check
      _
    $region27: #{graph_compression_forward.2} parent=1 // pred_check_branch
      %117 = sbr.rel (0) target = $region29
    $region28: #{graph_compression_forward.2} parent=1 // pred_region
      _
    $region29: #{graph_compression_forward.2} parent=1 // pred_fallthru
      _
    // Predicated region
    $region30: #{graph_compression_forward.2} parent=1 // pred_check
      _
    $region31: #{graph_compression_forward.2} parent=1 // pred_check_branch
      %119 = sbr.rel (0) target = $region33
    $region32: #{graph_compression_forward.2} parent=1 // pred_region
      %121 = vsyncadd [#allocation6], 0
      %s123 = sshll.u32 %s15, 4
      %s124 = int_to_ptr.hbm [resolvable:$true] %s123
      %s125 = sshll.u32 [#allocation7], 4
      %s126 = int_to_ptr.vmem [resolvable:$true] %s125
      %128 = dma.hbm_to_vmem [thread:$0]  %s124, 16, %s126, [#allocation6]
    $region33: #{graph_compression_forward.2} parent=1 // pred_fallthru
      _
    // Predicated region
    $region34: #{graph_compression_forward.2} parent=1 // pred_check
      _
    $region35: #{graph_compression_forward.2} parent=1 // pred_check_branch
      %130 = sbr.rel (0) target = $region37
    $region36: #{graph_compression_forward.2} parent=1 // pred_region
      _
    $region37: #{graph_compression_forward.2} parent=1 // pred_fallthru
      _
    // Predicated region
    $region38: #{graph_compression_forward.2} parent=1 // pred_check
      _
    $region39: #{graph_compression_forward.2} parent=1 // pred_check_branch
      %132 = sbr.rel (0) target = $region41
    $region40: #{graph_compression_forward.2} parent=1 // pred_region
      %134 = vsyncadd [#allocation9], 0
      %s136 = sshll.u32 %s19, 4
      %s137 = int_to_ptr.hbm [resolvable:$true] %s136
      %s138 = sshll.u32 [#allocation8], 4
      %s139 = int_to_ptr.vmem [resolvable:$true] %s138
      %141 = dma.hbm_to_vmem [thread:$0]  %s137, 16, %s139, [#allocation9]
    $region41: #{graph_compression_forward.2} parent=1 // pred_fallthru
      _
    // Predicated region
    $region42: #{graph_compression_forward.2} parent=1 // pred_check
      _
    $region43: #{graph_compression_forward.2} parent=1 // pred_check_branch
      %143 = sbr.rel (0) target = $region45
    $region44: #{graph_compression_forward.2} parent=1 // pred_region
      _
    $region45: #{graph_compression_forward.2} parent=1 // pred_fallthru
      _
    // Predicated region
    $region46: #{graph_compression_forward.2} parent=1 // pred_check
      _
    $region47: #{graph_compression_forward.2} parent=1 // pred_check_branch
      %145 = sbr.rel (0) target = $region49
    $region48: #{graph_compression_forward.2} parent=1 // pred_region
      %147 = vsyncadd [#allocation9], 0
      %s149 = sshll.u32 %s23, 4
      %s150 = int_to_ptr.hbm [resolvable:$true] %s149
      %s151 = sshll.u32 [#allocation10], 4
      %s152 = int_to_ptr.vmem [resolvable:$true] %s151
      %154 = dma.hbm_to_vmem [thread:$0]  %s150, 16, %s152, [#allocation9]
    $region49: #{graph_compression_forward.2} parent=1 // pred_fallthru
      _
    // Predicated region
    $region50: #{graph_compression_forward.2} parent=1 // pred_check
      _
    $region51: #{graph_compression_forward.2} parent=1 // pred_check_branch
      %156 = sbr.rel (0) target = $region53
    $region52: #{graph_compression_forward.2} parent=1 // pred_region
      _
    $region53: #{graph_compression_forward.2} parent=1 // pred_fallthru
      _
    // Predicated region
    $region54: #{graph_compression_forward.2} parent=1 // pred_check
      _
    $region55: #{graph_compression_forward.2} parent=1 // pred_check_branch
      %158 = sbr.rel (0) target = $region57
    $region56: #{graph_compression_forward.2} parent=1 // pred_region
      %160 = vsyncadd [#allocation12], 0
      %s162 = sshll.u32 %s27, 4
      %s163 = int_to_ptr.hbm [resolvable:$true] %s162
      %s164 = sshll.u32 [#allocation11], 4
      %s165 = int_to_ptr.vmem [resolvable:$true] %s164
      %167 = dma.hbm_to_vmem [thread:$0]  %s163, 16, %s165, [#allocation12]
    $region57: #{graph_compression_forward.2} parent=1 // pred_fallthru
      _
    // Predicated region
    $region58: #{graph_compression_forward.2} parent=1 // pred_check
      _
    $region59: #{graph_compression_forward.2} parent=1 // pred_check_branch
      %169 = sbr.rel (0) target = $region61
    $region60: #{graph_compression_forward.2} parent=1 // pred_region
      _
    $region61: #{graph_compression_forward.2} parent=1 // pred_fallthru
      _
    // Predicated region
    $region62: #{graph_compression_forward.2} parent=1 // pred_check
      _
    $region63: #{graph_compression_forward.2} parent=1 // pred_check_branch
      %171 = sbr.rel (0) target = $region65
    $region64: #{graph_compression_forward.2} parent=1 // pred_region
      %173 = vsyncadd [#allocation12], 0
      %s175 = sshll.u32 %s31, 4
      %s176 = int_to_ptr.hbm [resolvable:$true] %s175
      %s177 = sshll.u32 [#allocation13], 4
      %s178 = int_to_ptr.vmem [resolvable:$true] %s177
      %180 = dma.hbm_to_vmem [thread:$0]  %s176, 16, %s178, [#allocation12]
    $region65: #{graph_compression_forward.2} parent=1 // pred_fallthru
      _
    // Predicated region
    $region66: #{graph_compression_forward.2} parent=1 // pred_check
      _
    $region67: #{graph_compression_forward.2} parent=1 // pred_check_branch
      %182 = sbr.rel (0) target = $region69
    $region68: #{graph_compression_forward.2} parent=1 // pred_region
      _
    $region69: #{graph_compression_forward.2} parent=1 // pred_fallthru
      _
    // Predicated region
    $region70: #{graph_compression_forward.2} parent=1 // pred_check
      _
    $region71: #{graph_compression_forward.2} parent=1 // pred_check_branch
      %184 = sbr.rel (0) target = $region73
    $region72: #{graph_compression_forward.2} parent=1 // pred_region
      %186 = vsyncadd [#allocation15], 0
      %s188 = sshll.u32 %s35, 4
      %s189 = int_to_ptr.hbm [resolvable:$true] %s188
      %s190 = sshll.u32 [#allocation14], 4
      %s191 = int_to_ptr.vmem [resolvable:$true] %s190
      %193 = dma.hbm_to_vmem [thread:$0]  %s189, 16, %s191, [#allocation15]
    $region73: #{graph_compression_forward.2} parent=1 // pred_fallthru
      _
    // Predicated region
    $region74: #{graph_compression_forward.2} parent=1 // pred_check
      _
    $region75: #{graph_compression_forward.2} parent=1 // pred_check_branch
      %195 = sbr.rel (0) target = $region77
    $region76: #{graph_compression_forward.2} parent=1 // pred_region
      _
    $region77: #{graph_compression_forward.2} parent=1 // pred_fallthru
      _
    // Predicated region
    $region78: #{graph_compression_forward.2} parent=1 // pred_check
      _
    $region79: #{graph_compression_forward.2} parent=1 // pred_check_branch
      %197 = sbr.rel (0) target = $region81
    $region80: #{graph_compression_forward.2} parent=1 // pred_region
      %199 = vsyncadd [#allocation15], 0
      %s201 = sshll.u32 %s39, 4
      %s202 = int_to_ptr.hbm [resolvable:$true] %s201
      %s203 = sshll.u32 [#allocation16], 4
      %s204 = int_to_ptr.vmem [resolvable:$true] %s203
      %206 = dma.hbm_to_vmem [thread:$0]  %s202, 16, %s204, [#allocation15]
    $region81: #{graph_compression_forward.2} parent=1 // pred_fallthru
      _
    // Predicated region
    $region82: #{graph_compression_forward.2} parent=1 // pred_check
      _
    $region83: #{graph_compression_forward.2} parent=1 // pred_check_branch
      %208 = sbr.rel (0) target = $region85
    $region84: #{graph_compression_forward.2} parent=1 // pred_region
      %210 = vsyncadd [#allocation18], 0
      %s211 = sshll.u32 %s41, 4
      %s212 = int_to_ptr.hbm [resolvable:$true] %s211
      %s213 = sshll.u32 [#allocation17], 4
      %s214 = int_to_ptr.vmem [resolvable:$true] %s213
      %219 = dma.hbm_to_vmem [thread:$0]  %s212, 128, %s214, [#allocation18], 64, 64, 4
    $region85: #{graph_compression_forward.2} parent=1 // pred_fallthru
      _
    // Predicated region
    $region86: #{graph_compression_forward.2} parent=1 // pred_check
      _
    $region87: #{graph_compression_forward.2} parent=1 // pred_check_branch
      %221 = sbr.rel (0) target = $region89
    $region88: #{graph_compression_forward.2} parent=1 // pred_region
      %223 = vsyncadd [#allocation18], 0
      %s225 = sshll.u32 %s43, 4
      %s226 = int_to_ptr.hbm [resolvable:$true] %s225
      %s227 = sshll.u32 [#allocation19], 4
      %s228 = int_to_ptr.vmem [resolvable:$true] %s227
      %230 = dma.hbm_to_vmem [thread:$0]  %s226, 16, %s228, [#allocation18]
    $region89: #{graph_compression_forward.2} parent=1 // pred_fallthru
      _
    // Predicated region
    $region90: #{graph_compression_forward.2} parent=1 // pred_check
      _
    $region91: #{graph_compression_forward.2} parent=1 // pred_check_branch
      %232 = sbr.rel (0) target = $region93
    $region92: #{graph_compression_forward.2} parent=1 // pred_region
      _
    $region93: #{graph_compression_forward.2} parent=1 // pred_fallthru
      _
    // Predicated region
    $region94: #{graph_compression_forward.2} parent=1 // pred_check
      _
    $region95: #{graph_compression_forward.2} parent=1 // pred_check_branch
      %234 = sbr.rel (0) target = $region97
    $region96: #{graph_compression_forward.2} parent=1 // pred_region
      %236 = vsyncadd [#allocation21], 0
      %s238 = sshll.u32 %s47, 4
      %s239 = int_to_ptr.hbm [resolvable:$true] %s238
      %s240 = sshll.u32 [#allocation20], 4
      %s241 = int_to_ptr.vmem [resolvable:$true] %s240
      %243 = dma.hbm_to_vmem [thread:$0]  %s239, 16, %s241, [#allocation21]
    $region97: #{graph_compression_forward.2} parent=1 // pred_fallthru
      _
    // Predicated region
    $region98: #{graph_compression_forward.2} parent=1 // pred_check
      _
    $region99: #{graph_compression_forward.2} parent=1 // pred_check_branch
      %245 = sbr.rel (0) target = $region101
    $region100: #{graph_compression_forward.2} parent=1 // pred_region
      %247 = vsyncadd [#allocation21], 0
      %s248 = sshll.u32 %s49, 4
      %s249 = int_to_ptr.hbm [resolvable:$true] %s248
      %s250 = sshll.u32 [#allocation22], 4
      %s251 = int_to_ptr.vmem [resolvable:$true] %s250
      %256 = dma.hbm_to_vmem [thread:$0]  %s249, 256, %s251, [#allocation21], 64, 64, 4
    $region101: #{graph_compression_forward.2} parent=1 // pred_fallthru
      _
    // Predicated region
    $region102: #{graph_compression_forward.2} parent=1 // pred_check
      _
    $region103: #{graph_compression_forward.2} parent=1 // pred_check_branch
      %258 = sbr.rel (0) target = $region105
    $region104: #{graph_compression_forward.2} parent=1 // pred_region
      %260 = vsyncadd [#allocation24], 0
      %s261 = sshll.u32 %s51, 4
      %s262 = int_to_ptr.hbm [resolvable:$true] %s261
      %s263 = sshll.u32 [#allocation23], 4
      %s264 = int_to_ptr.vmem [resolvable:$true] %s263
      %269 = dma.hbm_to_vmem [thread:$0]  %s262, 256, %s264, [#allocation24], 64, 64, 4
    $region105: #{graph_compression_forward.2} parent=1 // pred_fallthru
      _
    // Predicated region
    $region106: #{graph_compression_forward.2} parent=1 // pred_check
      _
    $region107: #{graph_compression_forward.2} parent=1 // pred_check_branch
      %271 = sbr.rel (0) target = $region109
    $region108: #{graph_compression_forward.2} parent=1 // pred_region
      %273 = vsyncadd [#allocation24], 0
      %s275 = sshll.u32 %s53, 4
      %s276 = int_to_ptr.hbm [resolvable:$true] %s275
      %s277 = sshll.u32 [#allocation25], 4
      %s278 = int_to_ptr.vmem [resolvable:$true] %s277
      %280 = dma.hbm_to_vmem [thread:$0]  %s276, 16, %s278, [#allocation24]
    $region109: #{graph_compression_forward.2} parent=1 // pred_fallthru
      _
    // Predicated region
    $region110: #{graph_compression_forward.2} parent=1 // pred_check
      _
    $region111: #{graph_compression_forward.2} parent=1 // pred_check_branch
      %282 = sbr.rel (0) target = $region113
    $region112: #{graph_compression_forward.2} parent=1 // pred_region
      %284 = dma.done [#allocation3], 16
    $region113: #{graph_compression_forward.2} parent=1 // pred_fallthru
      _
    // Predicated region
    $region114: #{graph_compression_forward.2} parent=1 // pred_check
      _
    $region115: #{graph_compression_forward.2} parent=1 // pred_check_branch
      %286 = sbr.rel (0) target = $region117
    $region116: #{graph_compression_forward.2} parent=1 // pred_region
      %288 = dma.done [#allocation6], 16
    $region117: #{graph_compression_forward.2} parent=1 // pred_fallthru
      _
    // Predicated region
    $region118: #{graph_compression_forward.2} parent=1 // pred_check
      _
    $region119: #{graph_compression_forward.2} parent=1 // pred_check_branch
      %290 = sbr.rel (0) target = $region121
    $region120: #{graph_compression_forward.2} parent=1 // pred_region
      %292 = dma.done [#allocation6], 16
    $region121: #{graph_compression_forward.2} parent=1 // pred_fallthru
      _
    // Predicated region
    $region122: #{graph_compression_forward.2} parent=1 // pred_check
      _
    $region123: #{graph_compression_forward.2} parent=1 // pred_check_branch
      %294 = sbr.rel (0) target = $region125
    $region124: #{graph_compression_forward.2} parent=1 // pred_region
      %296 = dma.done [#allocation9], 16
    $region125: #{graph_compression_forward.2} parent=1 // pred_fallthru
      _
    // Predicated region
    $region126: #{graph_compression_forward.2} parent=1 // pred_check
      _
    $region127: #{graph_compression_forward.2} parent=1 // pred_check_branch
      %298 = sbr.rel (0) target = $region129
    $region128: #{graph_compression_forward.2} parent=1 // pred_region
      %300 = dma.done [#allocation9], 16
    $region129: #{graph_compression_forward.2} parent=1 // pred_fallthru
      _
    // Predicated region
    $region130: #{graph_compression_forward.2} parent=1 // pred_check
      _
    $region131: #{graph_compression_forward.2} parent=1 // pred_check_branch
      %302 = sbr.rel (0) target = $region133
    $region132: #{graph_compression_forward.2} parent=1 // pred_region
      %304 = dma.done [#allocation12], 16
    $region133: #{graph_compression_forward.2} parent=1 // pred_fallthru
      _
    // Predicated region
    $region134: #{graph_compression_forward.2} parent=1 // pred_check
      _
    $region135: #{graph_compression_forward.2} parent=1 // pred_check_branch
      %306 = sbr.rel (0) target = $region137
    $region136: #{graph_compression_forward.2} parent=1 // pred_region
      %308 = dma.done [#allocation12], 16
    $region137: #{graph_compression_forward.2} parent=1 // pred_fallthru
      _
    // Predicated region
    $region138: #{graph_compression_forward.2} parent=1 // pred_check
      _
    $region139: #{graph_compression_forward.2} parent=1 // pred_check_branch
      %310 = sbr.rel (0) target = $region141
    $region140: #{graph_compression_forward.2} parent=1 // pred_region
      %312 = dma.done [#allocation15], 16
    $region141: #{graph_compression_forward.2} parent=1 // pred_fallthru
      _
    // Predicated region
    $region142: #{graph_compression_forward.2} parent=1 // pred_check
      _
    $region143: #{graph_compression_forward.2} parent=1 // pred_check_branch
      %314 = sbr.rel (0) target = $region145
    $region144: #{graph_compression_forward.2} parent=1 // pred_region
      %316 = dma.done [#allocation15], 16
    $region145: #{graph_compression_forward.2} parent=1 // pred_fallthru
      _
    // Predicated region
    $region146: #{graph_compression_forward.2} parent=1 // pred_check
      _
    $region147: #{graph_compression_forward.2} parent=1 // pred_check_branch
      %318 = sbr.rel (0) target = $region149
    $region148: #{graph_compression_forward.2} parent=1 // pred_region
      %320 = dma.done [#allocation18], 128
    $region149: #{graph_compression_forward.2} parent=1 // pred_fallthru
      _
    // Predicated region
    $region150: #{graph_compression_forward.2} parent=1 // pred_check
      _
    $region151: #{graph_compression_forward.2} parent=1 // pred_check_branch
      %322 = sbr.rel (0) target = $region153
    $region152: #{graph_compression_forward.2} parent=1 // pred_region
      %324 = dma.done [#allocation18], 16
    $region153: #{graph_compression_forward.2} parent=1 // pred_fallthru
      _
    // Predicated region
    $region154: #{graph_compression_forward.2} parent=1 // pred_check
      _
    $region155: #{graph_compression_forward.2} parent=1 // pred_check_branch
      %326 = sbr.rel (0) target = $region157
    $region156: #{graph_compression_forward.2} parent=1 // pred_region
      %328 = dma.done [#allocation21], 16
    $region157: #{graph_compression_forward.2} parent=1 // pred_fallthru
      _
    // Predicated region
    $region158: #{graph_compression_forward.2} parent=1 // pred_check
      _
    $region159: #{graph_compression_forward.2} parent=1 // pred_check_branch
      %330 = sbr.rel (0) target = $region161
    $region160: #{graph_compression_forward.2} parent=1 // pred_region
      %332 = dma.done [#allocation21], 256
    $region161: #{graph_compression_forward.2} parent=1 // pred_fallthru
      _
    // Predicated region
    $region162: #{graph_compression_forward.2} parent=1 // pred_check
      _
    $region163: #{graph_compression_forward.2} parent=1 // pred_check_branch
      %334 = sbr.rel (0) target = $region165
    $region164: #{graph_compression_forward.2} parent=1 // pred_region
      %336 = dma.done [#allocation24], 256
    $region165: #{graph_compression_forward.2} parent=1 // pred_fallthru
      _
    // Predicated region
    $region166: #{graph_compression_forward.2} parent=1 // pred_check
      _
    $region167: #{graph_compression_forward.2} parent=1 // pred_check_branch
      %338 = sbr.rel (0) target = $region169
    $region168: #{graph_compression_forward.2} parent=1 // pred_region
      %340 = dma.done [#allocation24], 16
    $region169: #{graph_compression_forward.2} parent=1 // pred_fallthru
      _
    %v342 = vld [vmem:[%s1] sm:$0xf]
    %v343 = vld [vmem:[%s1 + $0x4] sm:$0xf]
    %v344 = vld [vmem:[%s3] sm:$0xf]
    %v345 = vld [vmem:[%s3 + $0x4] sm:$0xf]
    %v348 = vunpack.c.l.b16 %v344
    %v349 = vunpack.c.l.b16 %v345
    %v350 = vpack.c.b16 %v349, %v348
    %v353 = vunpack.c.l.b16 %v342
    %v354 = vunpack.c.l.b16 %v343
    %v355 = vpack.c.b16 %v354, %v353
    %vm357 = vcmask 130048
    %v359 = vsel %vm357, %v350, 0
    %361 = vmatpush.bf16.msra.mxu0 0
    %362 = vmatpush.bf16.msra.mxu0 0
    %363 = vmatpush.bf16.msra.mxu0 0
    %364 = vmatpush.bf16.msra.mxu0 0
    %365 = vmatpush.bf16.msra.mxu0 0
    %366 = vmatpush.bf16.msra.mxu0 0
    %367 = vmatpush.bf16.msra.mxu0 0
    %368 = vmatpush.bf16.msra.mxu0 %v355
    %369 = vmatmul.bf16.gmra.mxu0 %v359
    %v370 = vpop.f32.mrf.mxu0
    %v371 = vadd.f32 0.0, %v370
    %v372 = vpop.f32.mrf.mxu0
    %v373 = vadd.f32 0.0, %v372
    %374 = vdwg.mxu0
    %v375 = vld [vmem:[%s5] sm:$0xf]
    %v376 = vld [vmem:[%s5 + $0x4] sm:$0xf]
    %v377 = vpack.c.bf16 %v373, %v371
    %v378 = vld [vmem:[#allocation2] sm:$0x1]
    %v380 = vperm.slane %v378, 0
    %v384 = vunpack.c.l.b16 %v375
    %v385 = vunpack.c.l.b16 %v376
    %v386 = vpack.c.b16 %v385, %v384
    %v389 = vsel %vm357, %v377, 0
    %391 = vmatpush.bf16.msra.mxu0 0
    %392 = vmatpush.bf16.msra.mxu0 0
    %393 = vmatpush.bf16.msra.mxu0 0
    %394 = vmatpush.bf16.msra.mxu0 0
    %395 = vmatpush.bf16.msra.mxu0 0
    %396 = vmatpush.bf16.msra.mxu0 0
    %397 = vmatpush.bf16.msra.mxu0 0
    %398 = vmatpush.bf16.msra.mxu0 %v386
    %399 = vmatmul.bf16.gmra.mxu0 %v389
    %v400 = vpop.f32.mrf.mxu0
    %v401 = vadd.f32 %v380, %v400
    %v402 = vpop.f32.mrf.mxu0
    %v403 = vadd.f32 %v380, %v402
    %404 = vdwg.mxu0
    %v405 = vmax.f32 %v401, 0.0
    %v406 = vmax.f32 %v403, 0.0
    %v407 = vld [vmem:[%s9] sm:$0xf]
    %v408 = vld [vmem:[%s9 + $0x4] sm:$0xf]
    %v409 = vld [vmem:[%s9 + $0x8] sm:$0xf]
    %v410 = vld [vmem:[%s9 + $0xc] sm:$0xf]
    %v411 = vpack.c.bf16 %v406, %v405
    %v416 = vunpack.c.l.b16 %v407
    %v417 = vunpack.c.l.b16 %v408
    %v418 = vunpack.c.l.b16 %v409
    %v419 = vunpack.c.l.b16 %v410
    %v420 = vpack.c.b16 %v417, %v416
    %v421 = vpack.c.b16 %v419, %v418
    %vm424 = vcmask 261120
    %v426 = vsel %vm424, %v411, 0
    %428 = vmatpush.bf16.msra.mxu0 0
    %429 = vmatpush.bf16.msra.mxu0 0
    %430 = vmatpush.bf16.msra.mxu0 0
    %431 = vmatpush.bf16.msra.mxu0 0
    %432 = vmatpush.bf16.msra.mxu0 0
    %433 = vmatpush.bf16.msra.mxu0 0
    %434 = vmatpush.bf16.msra.mxu0 %v421
    %435 = vmatpush.bf16.msra.mxu0 %v420
    %436 = vmatmul.bf16.gmra.mxu0 %v426
    %v437 = vpop.f32.mrf.mxu0
    %v438 = vadd.f32 0.0, %v437
    %v439 = vpop.f32.mrf.mxu0
    %v440 = vadd.f32 0.0, %v439
    %441 = vdwg.mxu0
    %v442 = vld [vmem:[#allocation5] sm:$0x1]
    %v444 = vperm.slane %v442, 0
    %446 = vmatpush.msra.mxu0 0.0
    %447 = vmatpush.msra.mxu0 0.0
    %448 = vmatpush.msra.mxu0 0.0
    %449 = vmatpush.msra.mxu0 0.0
    %450 = vmatpush.msra.mxu0 0.0
    %451 = vmatpush.msra.mxu0 0.0
    %452 = vmatpush.msra.mxu0 0.0
    %453 = vmatpush.msra.mxu0 0.0
    %454 = vmatpush.msra.mxu0 0.0
    %455 = vmatpush.msra.mxu0 0.0
    %456 = vmatpush.msra.mxu0 0.0
    %457 = vmatpush.msra.mxu0 0.0
    %458 = vmatpush.msra.mxu0 0.0
    %459 = vmatpush.msra.mxu0 0.0
    %460 = vmatpush.msra.mxu0 %v440
    %461 = vmatpush.msra.mxu0 %v438
    %462 = vmatmul.bf16.gmra.mxu0 %v359
    %v463 = vpop.f32.mrf.mxu0
    %v464 = vadd.f32 %v444, %v463
    %v465 = vpop.f32.mrf.mxu0
    %v466 = vadd.f32 %v444, %v465
    %467 = vdwg.mxu0
    %v468 = vmax.f32 %v464, 0.0
    %v469 = vmax.f32 %v466, 0.0
    %v470 = vld [vmem:[%s13] sm:$0xf]
    %v471 = vld [vmem:[%s13 + $0x4] sm:$0xf]
    %v472 = vld [vmem:[%s13 + $0x8] sm:$0xf]
    %v473 = vld [vmem:[%s13 + $0xc] sm:$0xf]
    %v474 = vpack.c.bf16 %v469, %v468
    %v479 = vunpack.c.l.b16 %v470
    %v480 = vunpack.c.l.b16 %v471
    %v481 = vunpack.c.l.b16 %v472
    %v482 = vunpack.c.l.b16 %v473
    %v483 = vpack.c.b16 %v480, %v479
    %v484 = vpack.c.b16 %v482, %v481
    %v488 = vsel %vm424, %v474, 0
    %490 = vmatpush.bf16.msra.mxu0 0
    %491 = vmatpush.bf16.msra.mxu0 0
    %492 = vmatpush.bf16.msra.mxu0 0
    %493 = vmatpush.bf16.msra.mxu0 0
    %494 = vmatpush.bf16.msra.mxu0 0
    %495 = vmatpush.bf16.msra.mxu0 0
    %496 = vmatpush.bf16.msra.mxu0 %v484
    %497 = vmatpush.bf16.msra.mxu0 %v483
    %498 = vmatmul.bf16.gmra.mxu0 %v488
    %v499 = vpop.f32.mrf.mxu0
    %v500 = vadd.f32 0.0, %v499
    %v501 = vpop.f32.mrf.mxu0
    %v502 = vadd.f32 0.0, %v501
    %503 = vdwg.mxu0
    %v504 = vld [vmem:[#allocation7] sm:$0x1]
    %v506 = vperm.slane %v504, 0
    %508 = vmatpush.msra.mxu0 0.0
    %509 = vmatpush.msra.mxu0 0.0
    %510 = vmatpush.msra.mxu0 0.0
    %511 = vmatpush.msra.mxu0 0.0
    %512 = vmatpush.msra.mxu0 0.0
    %513 = vmatpush.msra.mxu0 0.0
    %514 = vmatpush.msra.mxu0 0.0
    %515 = vmatpush.msra.mxu0 0.0
    %516 = vmatpush.msra.mxu0 0.0
    %517 = vmatpush.msra.mxu0 0.0
    %518 = vmatpush.msra.mxu0 0.0
    %519 = vmatpush.msra.mxu0 0.0
    %520 = vmatpush.msra.mxu0 0.0
    %521 = vmatpush.msra.mxu0 0.0
    %522 = vmatpush.msra.mxu0 %v502
    %523 = vmatpush.msra.mxu0 %v500
    %524 = vmatmul.bf16.gmra.mxu0 %v359
    %v525 = vpop.f32.mrf.mxu0
    %v526 = vadd.f32 %v506, %v525
    %v527 = vpop.f32.mrf.mxu0
    %v528 = vadd.f32 %v506, %v527
    %529 = vdwg.mxu0
    %v530 = vsel %vm424, %v526, 0.0
    %531 = vadd.xlane.f32.xlu0 %v530
    %v532 = vpop.xlane.xlu0 %531
    %v533 = vsel %vm424, %v528, 0.0
    %534 = vadd.xlane.f32.xlu0 %v533
    %v535 = vpop.xlane.xlu0 %534
    %v536 = vrcp.pop 32.0
    %v537 = vmul.f32 32.0, %v536
    %v538 = vsub.f32 1.0, %v537
    %v539 = vmul.f32 %v536, %v538
    %v540 = vadd.f32 %v536, %v539
    %vm541 = vweird.f32 %v536
    %v542 = vsel %vm541, %v536, %v540
    %v543 = vmul.f32 %v532, %v542
    %v544 = vmul.f32 %v535, %v542
    %v545 = vsub.f32 %v526, %v543
    %v546 = vsub.f32 %v528, %v544
    %v547 = vmul.f32 %v545, %v545
    %v548 = vmul.f32 %v546, %v546
    %v549 = vsel %vm424, %v547, 0.0
    %550 = vadd.xlane.f32.xlu0 %v549
    %v551 = vpop.xlane.xlu0 %550
    %v552 = vsel %vm424, %v548, 0.0
    %553 = vadd.xlane.f32.xlu0 %v552
    %v554 = vpop.xlane.xlu0 %553
    %v555 = vmul.f32 %v551, %v542
    %v556 = vmul.f32 %v554, %v542
    %v557 = vadd.f32 %v555, 1e-05
    %v558 = vadd.f32 %v556, 1e-05
    %v559 = vrsqrt.pop %v557
    %v560 = vmul.f32 %v559, %v557
    %v561 = vmul.f32 %v560, %v559
    %v562 = vmul.f32 0.5, %v561
    %v563 = vsub.f32 1.5, %v562
    %v564 = vmul.f32 %v559, %v563
    %vm565 = vweird.f32 %v557
    %vm566 = vweird.f32 %v559
    %vm567 = vmor %vm565, %vm566
    %v568 = vsel %vm567, %v559, %v564
    %v569 = vrsqrt.pop %v558
    %v570 = vmul.f32 %v569, %v558
    %v571 = vmul.f32 %v570, %v569
    %v572 = vmul.f32 0.5, %v571
    %v573 = vsub.f32 1.5, %v572
    %v574 = vmul.f32 %v569, %v573
    %vm575 = vweird.f32 %v558
    %vm576 = vweird.f32 %v569
    %vm577 = vmor %vm575, %vm576
    %v578 = vsel %vm577, %v569, %v574
    %v579 = vmul.f32 %v545, %v568
    %v580 = vmul.f32 %v546, %v578
    %v581 = vld [vmem:[%s17] sm:$0x1]
    %v583 = vperm.slane %v581, 0
    %v585 = vmul.f32 %v579, %v583
    %v586 = vmul.f32 %v580, %v583
    %v587 = vld [vmem:[#allocation8] sm:$0x1]
    %v589 = vperm.slane %v587, 0
    %v591 = vadd.f32 %v585, %v589
    %v592 = vadd.f32 %v586, %v589
    %593 = vst.msk [vmem:[#allocation27] sm:$0xff] %vm424, %v591
    %594 = vst.msk [vmem:[#allocation27 + $0x8] sm:$0xff] %vm424, %v592
    %v595 = vsel %vm424, %v591, 0.0
    %v596 = vsel %vm424, %v592, 0.0
    %v597 = vadd.f32 %v595, %v596
    %v598 = vrot.slane %v597, 4
    %v599 = vadd.f32 %v597, %v598
    %v600 = vrot.slane %v599, 2
    %v601 = vadd.f32 %v599, %v600
    %v602 = vrot.slane %v601, 1
    %v603 = vadd.f32 %v601, %v602
    %v604 = vrcp.pop 16.0
    %v605 = vmul.f32 16.0, %v604
    %v606 = vsub.f32 1.0, %v605
    %v607 = vmul.f32 %v604, %v606
    %v608 = vadd.f32 %v604, %v607
    %vm609 = vweird.f32 %v604
    %v610 = vsel %vm609, %v604, %v608
    %v611 = vmul.f32 %v603, %v610
    %vm612 = vcmask 253952
    %613 = vst.msk [vmem:[#allocation30] sm:$0x1] %vm612, %v611
    %v614 = vld [vmem:[%s21] sm:$0xf]
    %v615 = vld [vmem:[%s21 + $0x4] sm:$0xf]
    %v616 = vld [vmem:[%s21 + $0x8] sm:$0xf]
    %v617 = vld [vmem:[%s21 + $0xc] sm:$0xf]
    %v618 = vpack.c.bf16 %v592, %v591
    %v619 = vld [vmem:[#allocation10] sm:$0x1]
    %v621 = vperm.slane %v619, 0
    %v627 = vunpack.c.l.b16 %v614
    %v628 = vunpack.c.l.b16 %v615
    %v629 = vunpack.c.l.b16 %v616
    %v630 = vunpack.c.l.b16 %v617
    %v631 = vpack.c.b16 %v628, %v627
    %v632 = vpack.c.b16 %v630, %v629
    %v636 = vsel %vm424, %v618, 0
    %638 = vmatpush.bf16.msra.mxu0 0
    %639 = vmatpush.bf16.msra.mxu0 0
    %640 = vmatpush.bf16.msra.mxu0 0
    %641 = vmatpush.bf16.msra.mxu0 0
    %642 = vmatpush.bf16.msra.mxu0 0
    %643 = vmatpush.bf16.msra.mxu0 0
    %644 = vmatpush.bf16.msra.mxu0 %v632
    %645 = vmatpush.bf16.msra.mxu0 %v631
    %646 = vmatmul.bf16.gmra.mxu0 %v636
    %v647 = vpop.f32.mrf.mxu0
    %v648 = vadd.f32 %v621, %v647
    %v649 = vpop.f32.mrf.mxu0
    %v650 = vadd.f32 %v621, %v649
    %651 = vdwg.mxu0
    %v652 = vld [vmem:[%s25] sm:$0xf]
    %v653 = vld [vmem:[%s25 + $0x4] sm:$0xf]
    %v654 = vld [vmem:[%s25 + $0x8] sm:$0xf]
    %v655 = vld [vmem:[%s25 + $0xc] sm:$0xf]
    %v656 = vld [vmem:[#allocation11] sm:$0x1]
    %v658 = vperm.slane %v656, 0
    %v664 = vunpack.c.l.b16 %v652
    %v665 = vunpack.c.l.b16 %v653
    %v666 = vunpack.c.l.b16 %v654
    %v667 = vunpack.c.l.b16 %v655
    %v668 = vpack.c.b16 %v665, %v664
    %v669 = vpack.c.b16 %v667, %v666
    %672 = vmatpush.bf16.msra.mxu0 0
    %673 = vmatpush.bf16.msra.mxu0 0
    %674 = vmatpush.bf16.msra.mxu0 0
    %675 = vmatpush.bf16.msra.mxu0 0
    %676 = vmatpush.bf16.msra.mxu0 0
    %677 = vmatpush.bf16.msra.mxu0 0
    %678 = vmatpush.bf16.msra.mxu0 %v669
    %679 = vmatpush.bf16.msra.mxu0 %v668
    %680 = vmatmul.bf16.gmra.mxu0 %v636
    %v681 = vpop.f32.mrf.mxu0
    %v682 = vadd.f32 %v658, %v681
    %v683 = vpop.f32.mrf.mxu0
    %v684 = vadd.f32 %v658, %v683
    %685 = vdwg.mxu0
    %686 = vst.msk [vmem:[%s55] sm:$0xff] %vm357, %v648
    %687 = vst.msk [vmem:[%s55 + $0x8] sm:$0xff] %vm357, %v650
    %688 = vst.msk [vmem:[#allocation26] sm:$0xff] %vm357, %v682
    %689 = vst.msk [vmem:[#allocation26 + $0x8] sm:$0xff] %vm357, %v684
    %v690 = vld [vmem:[#allocation17] sm:$0xf]
    %v691 = vld [vmem:[#allocation17 + $0x4] sm:$0xf]
    %v692 = vpack.c.bf16 %v650, %v648
    %v693 = vld [vmem:[#allocation19] sm:$0x1]
    %v695 = vperm.slane %v693, 0
    %v699 = vunpack.c.l.b16 %v690
    %v700 = vunpack.c.l.b16 %v691
    %v701 = vpack.c.b16 %v700, %v699
    %v704 = vsel %vm357, %v692, 0
    %706 = vmatpush.bf16.msra.mxu0 0
    %707 = vmatpush.bf16.msra.mxu0 0
    %708 = vmatpush.bf16.msra.mxu0 0
    %709 = vmatpush.bf16.msra.mxu0 0
    %710 = vmatpush.bf16.msra.mxu0 0
    %711 = vmatpush.bf16.msra.mxu0 0
    %712 = vmatpush.bf16.msra.mxu0 0
    %713 = vmatpush.bf16.msra.mxu0 %v701
    %714 = vmatmul.bf16.gmra.mxu0 %v704
    %v715 = vpop.f32.mrf.mxu0
    %v716 = vadd.f32 %v695, %v715
    %v717 = vpop.f32.mrf.mxu0
    %v718 = vadd.f32 %v695, %v717
    %719 = vdwg.mxu0
    %v720 = vmax.f32 %v716, 0.0
    %v721 = vmax.f32 %v718, 0.0
    %v722 = vld [vmem:[%s45] sm:$0xf]
    %v723 = vld [vmem:[%s45 + $0x4] sm:$0xf]
    %v724 = vld [vmem:[%s45 + $0x8] sm:$0xf]
    %v725 = vld [vmem:[%s45 + $0xc] sm:$0xf]
    %v726 = vpack.c.bf16 %v721, %v720
    %v727 = vld [vmem:[#allocation20] sm:$0x1]
    %v729 = vperm.slane %v727, 0
    %v735 = vunpack.c.l.b16 %v722
    %v736 = vunpack.c.l.b16 %v723
    %v737 = vunpack.c.l.b16 %v724
    %v738 = vunpack.c.l.b16 %v725
    %v739 = vpack.c.b16 %v736, %v735
    %v740 = vpack.c.b16 %v738, %v737
    %v744 = vsel %vm424, %v726, 0
    %746 = vmatpush.bf16.msra.mxu0 0
    %747 = vmatpush.bf16.msra.mxu0 0
    %748 = vmatpush.bf16.msra.mxu0 0
    %749 = vmatpush.bf16.msra.mxu0 0
    %750 = vmatpush.bf16.msra.mxu0 0
    %751 = vmatpush.bf16.msra.mxu0 0
    %752 = vmatpush.bf16.msra.mxu0 %v740
    %753 = vmatpush.bf16.msra.mxu0 %v739
    %754 = vmatmul.bf16.gmra.mxu0 %v744
    %v755 = vpop.f32.mrf.mxu0
    %v756 = vadd.f32 %v729, %v755
    %v757 = vpop.f32.mrf.mxu0
    %v758 = vadd.f32 %v729, %v757
    %759 = vdwg.mxu0
    %760 = vst.msk [vmem:[#allocation32] sm:$0xff] %vm424, %v756
    %761 = vst.msk [vmem:[#allocation32 + $0x8] sm:$0xff] %vm424, %v758
    %v762 = vld [vmem:[%s29] sm:$0xf]
    %v763 = vld [vmem:[%s29 + $0x4] sm:$0xf]
    %v764 = vld [vmem:[#allocation13] sm:$0x1]
    %v766 = vperm.slane %v764, 0
    %v770 = vunpack.c.l.b16 %v762
    %v771 = vunpack.c.l.b16 %v763
    %v772 = vpack.c.b16 %v771, %v770
    %774 = vmatpush.bf16.msra.mxu0 0
    %775 = vmatpush.bf16.msra.mxu0 0
    %776 = vmatpush.bf16.msra.mxu0 0
    %777 = vmatpush.bf16.msra.mxu0 0
    %778 = vmatpush.bf16.msra.mxu0 0
    %779 = vmatpush.bf16.msra.mxu0 0
    %780 = vmatpush.bf16.msra.mxu0 0
    %781 = vmatpush.bf16.msra.mxu0 %v772
    %782 = vmatmul.bf16.gmra.mxu0 %v704
    %v783 = vpop.f32.mrf.mxu0
    %v784 = vadd.f32 %v766, %v783
    %v785 = vpop.f32.mrf.mxu0
    %v786 = vadd.f32 %v766, %v785
    %787 = vdwg.mxu0
    %v788 = vmax.f32 %v784, 0.0
    %v789 = vmax.f32 %v786, 0.0
    %v790 = vld [vmem:[%s33] sm:$0xf]
    %v791 = vld [vmem:[%s33 + $0x4] sm:$0xf]
    %v792 = vld [vmem:[%s33 + $0x8] sm:$0xf]
    %v793 = vld [vmem:[%s33 + $0xc] sm:$0xf]
    %v794 = vpack.c.bf16 %v789, %v788
    %v795 = vld [vmem:[#allocation14] sm:$0x1]
    %v797 = vperm.slane %v795, 0
    %v803 = vunpack.c.l.b16 %v790
    %v804 = vunpack.c.l.b16 %v791
    %v805 = vunpack.c.l.b16 %v792
    %v806 = vunpack.c.l.b16 %v793
    %v807 = vpack.c.b16 %v804, %v803
    %v808 = vpack.c.b16 %v806, %v805
    %v812 = vsel %vm424, %v794, 0
    %814 = vmatpush.bf16.msra.mxu0 0
    %815 = vmatpush.bf16.msra.mxu0 0
    %816 = vmatpush.bf16.msra.mxu0 0
    %817 = vmatpush.bf16.msra.mxu0 0
    %818 = vmatpush.bf16.msra.mxu0 0
    %819 = vmatpush.bf16.msra.mxu0 0
    %820 = vmatpush.bf16.msra.mxu0 %v808
    %821 = vmatpush.bf16.msra.mxu0 %v807
    %822 = vmatmul.bf16.gmra.mxu0 %v812
    %v823 = vpop.f32.mrf.mxu0
    %v824 = vadd.f32 %v797, %v823
    %v825 = vpop.f32.mrf.mxu0
    %v826 = vadd.f32 %v797, %v825
    %827 = vdwg.mxu0
    %v828 = vmax.f32 %v824, 0.0
    %v829 = vmax.f32 %v826, 0.0
    %v830 = vld [vmem:[%s37] sm:$0xf]
    %v831 = vld [vmem:[%s37 + $0x4] sm:$0xf]
    %v832 = vld [vmem:[%s37 + $0x8] sm:$0xf]
    %v833 = vld [vmem:[%s37 + $0xc] sm:$0xf]
    %v834 = vpack.c.bf16 %v829, %v828
    %v835 = vld [vmem:[#allocation16] sm:$0x1]
    %v837 = vperm.slane %v835, 0
    %v843 = vunpack.c.l.b16 %v830
    %v844 = vunpack.c.l.b16 %v831
    %v845 = vunpack.c.l.b16 %v832
    %v846 = vunpack.c.l.b16 %v833
    %v847 = vpack.c.b16 %v844, %v843
    %v848 = vpack.c.b16 %v846, %v845
    %v852 = vsel %vm424, %v834, 0
    %854 = vmatpush.bf16.msra.mxu0 0
    %855 = vmatpush.bf16.msra.mxu0 0
    %856 = vmatpush.bf16.msra.mxu0 0
    %857 = vmatpush.bf16.msra.mxu0 0
    %858 = vmatpush.bf16.msra.mxu0 0
    %859 = vmatpush.bf16.msra.mxu0 0
    %860 = vmatpush.bf16.msra.mxu0 %v848
    %861 = vmatpush.bf16.msra.mxu0 %v847
    %862 = vmatmul.bf16.gmra.mxu0 %v852
    %v863 = vpop.f32.mrf.mxu0
    %v864 = vadd.f32 %v837, %v863
    %v865 = vpop.f32.mrf.mxu0
    %v866 = vadd.f32 %v837, %v865
    %867 = vdwg.mxu0
    %868 = vst.msk [vmem:[#allocation29] sm:$0xff] %vm357, %v864
    %869 = vst.msk [vmem:[#allocation29 + $0x8] sm:$0xff] %vm357, %v866
    %v870 = vld [vmem:[#allocation22] sm:$0xf]
    %v871 = vld [vmem:[#allocation22 + $0x4] sm:$0xf]
    %v872 = vld [vmem:[#allocation22 + $0x8] sm:$0xf]
    %v873 = vld [vmem:[#allocation22 + $0xc] sm:$0xf]
    %v874 = vld [vmem:[#allocation25] sm:$0x1]
    %v876 = vperm.slane %v874, 0
    %v882 = vunpack.c.l.b16 %v870
    %v883 = vunpack.c.l.b16 %v871
    %v884 = vunpack.c.l.b16 %v872
    %v885 = vunpack.c.l.b16 %v873
    %v886 = vpack.c.b16 %v883, %v882
    %v887 = vpack.c.b16 %v885, %v884
    %890 = vmatpush.bf16.msra.mxu0 0
    %891 = vmatpush.bf16.msra.mxu0 0
    %892 = vmatpush.bf16.msra.mxu0 0
    %893 = vmatpush.bf16.msra.mxu0 0
    %894 = vmatpush.bf16.msra.mxu0 0
    %895 = vmatpush.bf16.msra.mxu0 0
    %896 = vmatpush.bf16.msra.mxu0 %v887
    %897 = vmatpush.bf16.msra.mxu0 %v886
    %898 = vmatmul.bf16.gmra.mxu0 %v812
    %v899 = vpop.f32.mrf.mxu0
    %v900 = vadd.f32 %v876, %v899
    %v901 = vpop.f32.mrf.mxu0
    %v902 = vadd.f32 %v876, %v901
    %903 = vdwg.mxu0
    %904 = vst.msk [vmem:[%s67] sm:$0xff] %vm424, %v900
    %905 = vst.msk [vmem:[%s67 + $0x8] sm:$0xff] %vm424, %v902
    %v906 = vld [vmem:[#allocation23] sm:$0xf]
    %v907 = vld [vmem:[#allocation23 + $0x4] sm:$0xf]
    %v908 = vld [vmem:[#allocation23 + $0x8] sm:$0xf]
    %v909 = vld [vmem:[#allocation23 + $0xc] sm:$0xf]
    %v914 = vunpack.c.l.b16 %v906
    %v915 = vunpack.c.l.b16 %v907
    %v916 = vunpack.c.l.b16 %v908
    %v917 = vunpack.c.l.b16 %v909
    %v918 = vpack.c.b16 %v915, %v914
    %v919 = vpack.c.b16 %v917, %v916
    %922 = vmatpush.bf16.msra.mxu0 0
    %923 = vmatpush.bf16.msra.mxu0 0
    %924 = vmatpush.bf16.msra.mxu0 0
    %925 = vmatpush.bf16.msra.mxu0 0
    %926 = vmatpush.bf16.msra.mxu0 0
    %927 = vmatpush.bf16.msra.mxu0 0
    %928 = vmatpush.bf16.msra.mxu0 %v919
    %929 = vmatpush.bf16.msra.mxu0 %v918
    %930 = vmatmul.bf16.gmra.mxu0 %v812
    %v931 = vpop.f32.mrf.mxu0
    %v932 = vadd.f32 0.0, %v931
    %v933 = vpop.f32.mrf.mxu0
    %v934 = vadd.f32 0.0, %v933
    %935 = vdwg.mxu0
    %936 = vst.msk [vmem:[%s69] sm:$0xff] %vm424, %v932
    %937 = vst.msk [vmem:[%s69 + $0x8] sm:$0xff] %vm424, %v934
    // Predicated region
    $region170: #{graph_compression_forward.2} parent=1 // pred_check
      _
    $region171: #{graph_compression_forward.2} parent=1 // pred_check_branch
      %939 = sbr.rel (0) target = $region173
    $region172: #{graph_compression_forward.2} parent=1 // pred_region
      _
    $region173: #{graph_compression_forward.2} parent=1 // pred_fallthru
      _
    // Predicated region
    $region174: #{graph_compression_forward.2} parent=1 // pred_check
      _
    $region175: #{graph_compression_forward.2} parent=1 // pred_check_branch
      %941 = sbr.rel (0) target = $region177
    $region176: #{graph_compression_forward.2} parent=1 // pred_region
      %943 = vsyncadd [#allocation4], 0
      %s944 = sshll.u32 [#allocation26], 4
      %s945 = int_to_ptr.vmem [resolvable:$true] %s944
      %s946 = sshll.u32 %s57, 4
      %s947 = int_to_ptr.hbm [resolvable:$true] %s946
      %952 = dma.vmem_to_hbm [thread:$0]  %s945, 256, %s947, [#allocation4], 128, 128, 8
    $region177: #{graph_compression_forward.2} parent=1 // pred_fallthru
      _
    // Predicated region
    $region178: #{graph_compression_forward.2} parent=1 // pred_check
      _
    $region179: #{graph_compression_forward.2} parent=1 // pred_check_branch
      %954 = sbr.rel (0) target = $region181
    $region180: #{graph_compression_forward.2} parent=1 // pred_region
      %956 = vsyncadd [#allocation28], 0
      %s957 = sshll.u32 [#allocation27], 4
      %s958 = int_to_ptr.vmem [resolvable:$true] %s957
      %s959 = sshll.u32 %s59, 4
      %s960 = int_to_ptr.hbm [resolvable:$true] %s959
      %965 = dma.vmem_to_hbm [thread:$0]  %s958, 256, %s960, [#allocation28], 128, 128, 8
    $region181: #{graph_compression_forward.2} parent=1 // pred_fallthru
      _
    // Predicated region
    $region182: #{graph_compression_forward.2} parent=1 // pred_check
      _
    $region183: #{graph_compression_forward.2} parent=1 // pred_check_branch
      %967 = sbr.rel (0) target = $region185
    $region184: #{graph_compression_forward.2} parent=1 // pred_region
      %969 = vsyncadd [#allocation28], 0
      %s970 = sshll.u32 [#allocation29], 4
      %s971 = int_to_ptr.vmem [resolvable:$true] %s970
      %s972 = sshll.u32 %s61, 4
      %s973 = int_to_ptr.hbm [resolvable:$true] %s972
      %978 = dma.vmem_to_hbm [thread:$0]  %s971, 256, %s973, [#allocation28], 128, 128, 8
    $region185: #{graph_compression_forward.2} parent=1 // pred_fallthru
      _
    // Predicated region
    $region186: #{graph_compression_forward.2} parent=1 // pred_check
      _
    $region187: #{graph_compression_forward.2} parent=1 // pred_check_branch
      %980 = sbr.rel (0) target = $region189
    $region188: #{graph_compression_forward.2} parent=1 // pred_region
      %982 = vsyncadd [#allocation31], 0
      %s984 = sshll.u32 [#allocation30], 4
      %s985 = int_to_ptr.vmem [resolvable:$true] %s984
      %s986 = sshll.u32 %s63, 4
      %s987 = int_to_ptr.hbm [resolvable:$true] %s986
      %989 = dma.vmem_to_hbm [thread:$0]  %s985, 16, %s987, [#allocation31]
    $region189: #{graph_compression_forward.2} parent=1 // pred_fallthru
      _
    // Predicated region
    $region190: #{graph_compression_forward.2} parent=1 // pred_check
      _
    $region191: #{graph_compression_forward.2} parent=1 // pred_check_branch
      %991 = sbr.rel (0) target = $region193
    $region192: #{graph_compression_forward.2} parent=1 // pred_region
      %993 = vsyncadd [#allocation31], 0
      %s994 = sshll.u32 [#allocation32], 4
      %s995 = int_to_ptr.vmem [resolvable:$true] %s994
      %s996 = sshll.u32 %s65, 4
      %s997 = int_to_ptr.hbm [resolvable:$true] %s996
      %1002 = dma.vmem_to_hbm [thread:$0]  %s995, 256, %s997, [#allocation31], 128, 128, 8
    $region193: #{graph_compression_forward.2} parent=1 // pred_fallthru
      _
    // Predicated region
    $region194: #{graph_compression_forward.2} parent=1 // pred_check
      _
    $region195: #{graph_compression_forward.2} parent=1 // pred_check_branch
      %1004 = sbr.rel (0) target = $region197
    $region196: #{graph_compression_forward.2} parent=1 // pred_region
      _
    $region197: #{graph_compression_forward.2} parent=1 // pred_fallthru
      _
    // Predicated region
    $region198: #{graph_compression_forward.2} parent=1 // pred_check
      _
    $region199: #{graph_compression_forward.2} parent=1 // pred_check_branch
      %1006 = sbr.rel (0) target = $region201
    $region200: #{graph_compression_forward.2} parent=1 // pred_region
      _
    $region201: #{graph_compression_forward.2} parent=1 // pred_fallthru
      _
    // Predicated region
    $region202: #{graph_compression_forward.2} parent=1 // pred_check
      _
    $region203: #{graph_compression_forward.2} parent=1 // pred_check_branch
      %1008 = sbr.rel (0) target = $region205
    $region204: #{graph_compression_forward.2} parent=1 // pred_region
      _
    $region205: #{graph_compression_forward.2} parent=1 // pred_fallthru
      _
    // Predicated region
    $region206: #{graph_compression_forward.2} parent=1 // pred_check
      _
    $region207: #{graph_compression_forward.2} parent=1 // pred_check_branch
      %1010 = sbr.rel (0) target = $region209
    $region208: #{graph_compression_forward.2} parent=1 // pred_region
      %1012 = dma.done [#allocation4], 256
    $region209: #{graph_compression_forward.2} parent=1 // pred_fallthru
      _
    // Predicated region
    $region210: #{graph_compression_forward.2} parent=1 // pred_check
      _
    $region211: #{graph_compression_forward.2} parent=1 // pred_check_branch
      %1014 = sbr.rel (0) target = $region213
    $region212: #{graph_compression_forward.2} parent=1 // pred_region
      %1016 = dma.done [#allocation28], 256
    $region213: #{graph_compression_forward.2} parent=1 // pred_fallthru
      _
    // Predicated region
    $region214: #{graph_compression_forward.2} parent=1 // pred_check
      _
    $region215: #{graph_compression_forward.2} parent=1 // pred_check_branch
      %1018 = sbr.rel (0) target = $region217
    $region216: #{graph_compression_forward.2} parent=1 // pred_region
      %1020 = dma.done [#allocation28], 256
    $region217: #{graph_compression_forward.2} parent=1 // pred_fallthru
      _
    // Predicated region
    $region218: #{graph_compression_forward.2} parent=1 // pred_check
      _
    $region219: #{graph_compression_forward.2} parent=1 // pred_check_branch
      %1022 = sbr.rel (0) target = $region221
    $region220: #{graph_compression_forward.2} parent=1 // pred_region
      %1024 = dma.done [#allocation31], 16
    $region221: #{graph_compression_forward.2} parent=1 // pred_fallthru
      _
    // Predicated region
    $region222: #{graph_compression_forward.2} parent=1 // pred_check
      _
    $region223: #{graph_compression_forward.2} parent=1 // pred_check_branch
      %1026 = sbr.rel (0) target = $region225
    $region224: #{graph_compression_forward.2} parent=1 // pred_region
      %1028 = dma.done [#allocation31], 256
    $region225: #{graph_compression_forward.2} parent=1 // pred_fallthru
      _
    // Predicated region
    $region226: #{graph_compression_forward.2} parent=1 // pred_check
      _
    $region227: #{graph_compression_forward.2} parent=1 // pred_check_branch
      %1030 = sbr.rel (0) target = $region229
    $region228: #{graph_compression_forward.2} parent=1 // pred_region
      _
    $region229: #{graph_compression_forward.2} parent=1 // pred_fallthru
      _
    // Predicated region
    $region230: #{graph_compression_forward.2} parent=1 // pred_check
      _
    $region231: #{graph_compression_forward.2} parent=1 // pred_check_branch
      %1032 = sbr.rel (0) target = $region233
    $region232: #{graph_compression_forward.2} parent=1 // pred_region
      _
    $region233: #{graph_compression_forward.2} parent=1 // pred_fallthru
      _
    %1033 = vsyncpa [#allocation3], 1
    %1034 = vsyncpa [#allocation6], 1
    %1035 = vsyncpa [#allocation9], 1
    %1036 = vsyncpa [#allocation12], 1
    %1037 = vsyncpa [#allocation15], 1
    %1038 = vsyncpa [#allocation18], 1
    %1039 = vsyncpa [#allocation21], 1
    %1040 = vsyncpa [#allocation24], 1
    %1041 = vsyncpa [#allocation4], 1
    %1042 = vsyncpa [#allocation28], 1
    %1043 = vsyncpa [#allocation31], 1

</llo_original>
